<compile_context>
chip_gen: v7x
topology: tpu7x:2x2x1
jax: 0.10.0
libtpu: 0.0.40
codegen_flags: <defaults>
</compile_context>

<pallas_src>
import functools

import jax
import jax.numpy as jnp
from jax.experimental import pallas as pl
from jax.experimental.pallas import tpu as pltpu


def _round_up(x, m):
    return ((x + m - 1) // m) * m


# ----------------------------------------------------------------------------
# In-kernel helpers
# ----------------------------------------------------------------------------
def _bn_train_2d(x, pool, gamma_cols, beta_cols):
    """Training-mode BatchNorm1d on x:(N, W); columns are (channel, time) pairs.

    `pool` is kron(I_C, ones(T,T)/T) scattered into the padded column layout.
    A single (2, W) @ (W, W) matmul on the stacked [E[x], E[x^2]] statistics
    both averages over time within each channel and broadcasts the per-channel
    statistic back to every column (padded columns have zero pool rows/cols and
    zero gamma/beta, so they stay exactly zero).
    """
    stats = jnp.concatenate([jnp.mean(x, axis=0, keepdims=True),
                             jnp.mean(x * x, axis=0, keepdims=True)], axis=0)   # (2, W)
    pooled = jnp.dot(stats, pool, preferred_element_type=jnp.float32)            # (2, W)
    mean = pooled[0:1, :]
    var = jnp.maximum(pooled[1:2, :] - mean * mean, 0.0)                         # biased var
    return (x - mean) * jax.lax.rsqrt(var + 1e-5) * gamma_cols + beta_cols


def _stl_gat_kernel(x_ref, wt_ref, bt_ref, p1_ref, g1_ref, b1_ref,
                    wg_ref, gbias_ref, adj_ref,
                    p2_ref, g2_ref, b2_ref, o_ref,
                    *, P, heads, concat, last):
    mxu = wg_ref.dtype                                   # bf16 (prod) or f32 (validation)
    x = x_ref[...]                                       # (N, Cin*T), already mxu dtype

    # (1) conv1 | conv2 | residual : ONE MXU matmul, 128-aligned segments -------
    z = jnp.dot(x, wt_ref[...], preferred_element_type=jnp.float32) + bt_ref[...]
    t = jnp.tanh(z[:, :P]) * jax.nn.sigmoid(z[:, P:2 * P])     # f32 transcendentals
    res = z[:, 2 * P:]                                          # (N, Wout) padded residual

    # (2) BatchNorm1d over Cout channels ----------------------------------------
    t = _bn_train_2d(t, p1_ref[...], g1_ref[...], b1_ref[...])

    # (3) GATConv (add_self_loops=False): one fused matmul gives per-head features
    #     plus alpha_dst / alpha_src columns -------------------------------------
    h_all = jnp.dot(t.astype(mxu), wg_ref[...], preferred_element_type=jnp.float32)
    adj = adj_ref[...]                                    # adj[i, j] = 1 iff edge j -> i
    AP = heads * P
    alpha_t = h_all[:, AP:].T                             # (128, N): rows = alpha columns
    heads_out = []
    for h in range(heads):                                # unrolled (heads is small)
        xf = h_all[:, h * P:(h + 1) * P]                  # (N, P) whole-vreg slice
        a_dst = h_all[:, AP + h:AP + h + 1]               # (N, 1) per-dst-node logit
        a_src = alpha_t[heads + h:heads + h + 1, :]       # (1, N) per-src-node logit
        e = a_dst + a_src                                 # (N_dst, N_src)
        e = jnp.where(e > 0, e, 0.2 * e)                  # LeakyReLU(0.2)
        em = jnp.where(adj > 0, e, -1e30)                 # mask non-edges (for the max)
        m = jnp.max(em, axis=1, keepdims=True)
        pz = jnp.where(adj > 0, jnp.exp(em - m), 0.0)     # masked exp, no extra multiply
        s = jnp.sum(pz, axis=1, keepdims=True)
        a = pz * pl.reciprocal(jnp.where(s > 0, s, 1.0), approx=True)  # EUP reciprocal
        heads_out.append(jnp.dot(a.astype(mxu), xf.astype(mxu),
                                 preferred_element_type=jnp.float32))
    if concat:
        g = jnp.concatenate(heads_out, axis=1)            # (N, heads*P)
    else:
        g = heads_out[0]
        for h in range(1, heads):
            g = g + heads_out[h]
        g = g * (1.0 / heads)                             # (N, P)
    g = g + gbias_ref[...]

    # (4) BatchNorm1d over Cres channels + residual (+ ReLU) ---------------------
    y = _bn_train_2d(g, p2_ref[...], g2_ref[...], b2_ref[...]) + res
    if not last:
        y = jnp.maximum(y, 0.0)
    o_ref[...] = y                                        # lane-dense (N, Wout >= 128)


# ----------------------------------------------------------------------------
# Wrapper: one pallas_call == the whole layer for a batch of graphs
# ----------------------------------------------------------------------------
def spatio_temporal_layer_gat_forward(prep, X, adj, *, out_channels, heads, concat, last):
    """X: (B, N, C_in, T) (or (N, C_in, T)); adj[i,j]=1 iff edge j->i.

    Returns (B, N, out_channels*factor, T) — same layout as the torch module.
    """
    if X.ndim == 3:
        return spatio_temporal_layer_gat_forward(
            prep, X[None], adj, out_channels=out_channels, heads=heads,
            concat=concat, last=last)[0]

    B, N, Cin, T = X.shape
    F = out_channels * T                       # per-head GAT dim == real TCN width
    P = _round_up(F, 128)                      # lane-aligned segment width
    Wout = heads * P if concat else P          # padded, lane-dense output width
    Cres = out_channels * (heads if concat else 1)
    x2 = X.reshape(B, N, Cin * T).astype(prep["w_tcn"].dtype)   # bf16 halves the DMA

    args = (x2, prep["w_tcn"], prep["b_tcn"],
            prep["bn1_pool"], prep["bn1_g"], prep["bn1_b"],
            prep["w_gat"], prep["gat_b"], adj,
            prep["bn2_pool"], prep["bn2_g"], prep["bn2_b"])

    def const_spec(a):                         # weights: resident across the batch grid
        nd = a.ndim
        return pl.BlockSpec(a.shape, lambda b, _n=nd: (0,) * _n)

    in_specs = ([pl.BlockSpec((None, N, Cin * T), lambda b: (b, 0, 0))]
                + [const_spec(a) for a in args[1:]])

    out_flat = pl.pallas_call(
        functools.partial(_stl_gat_kernel, P=P, heads=heads, concat=concat, last=last),
        grid=(B,),
        out_shape=jax.ShapeDtypeStruct((B, N, Wout), jnp.float32),
        in_specs=in_specs,
        out_specs=pl.BlockSpec((None, N, Wout), lambda b: (b, 0, 0)),
        compiler_params=pltpu.CompilerParams(dimension_semantics=("parallel",)),
    )(*args)

    # strip the lane padding (pure XLA slicing outside the kernel)
    if concat:
        out = out_flat.reshape(B, N, heads, P)[..., :F].reshape(B, N, Cres * T)
    else:
        out = out_flat[..., :F]
    return out.reshape(B, N, Cres, T)


# ----------------------------------------------------------------------------
# Parameters (module-shaped) + one-time preprocessing into fused, padded weights
# ----------------------------------------------------------------------------
def init_layer_params(key, *, n_sequences, in_channels, out_channels, heads, concat):
    T = n_sequences
    factor = heads if concat else 1
    F = out_channels * T
    out_dim = heads * F if concat else F
    keys = iter(jax.random.split(key, 16))

    def rand(shape, scale=0.1):
        return scale * jax.random.normal(next(keys), shape, jnp.float32)

    return {
        "conv1_w": rand((out_channels, in_channels, 3)), "conv1_b": rand((out_channels,)),
        "conv2_w": rand((out_channels, in_channels, 3)), "conv2_b": rand((out_channels,)),
        "res_w": rand((out_channels * factor, in_channels)),
        "res_b": rand((out_channels * factor,)),
        "bn1_g": jnp.ones((out_channels,), jnp.float32),
        "bn1_b": jnp.zeros((out_channels,), jnp.float32),
        "gat_lin_w": rand((F, heads * F)),
        "gat_att_src": rand((heads, F)), "gat_att_dst": rand((heads, F)),
        "gat_bias": rand((out_dim,)),
        "bn2_g": jnp.ones((out_channels * factor,), jnp.float32),
        "bn2_b": jnp.zeros((out_channels * factor,), jnp.float32),
    }


def prepare_params(p, *, n_sequences, dilation, heads, concat, mxu_dtype=jnp.bfloat16):
    """Fold convs + GAT projections into lane-aligned fused matmuls (one-time prep)."""
    T = n_sequences
    w1, b1 = p["conv1_w"], p["conv1_b"]
    w2, b2 = p["conv2_w"], p["conv2_b"]
    wr, br = p["res_w"], p["res_b"]
    Cout, Cin, K = w1.shape
    Cres = wr.shape[0]
    F = Cout * T
    P = _round_up(F, 128)
    Wout = heads * P if concat else P
    f32 = jnp.float32

    # real (torch) flat column j = c*T + t  ->  padded column (head-major, 128-aligned)
    j = jnp.arange(Cres * T)
    col_idx = (j // F) * P + (j % F)

    # --- gated TCN + 1x1 residual folded into one lane-aligned matmul ----------
    tt = jnp.arange(T)
    S = jnp.stack([(tt[:, None] == (tt[None, :] + (k - 1) * dilation)).astype(f32)
                   for k in range(K)])                                       # (K, T, T)
    M1 = jnp.einsum("oik,kst->isot", w1, S).reshape(Cin * T, F)
    M2 = jnp.einsum("oik,kst->isot", w2, S).reshape(Cin * T, F)
    MR = jnp.einsum("oi,st->isot", wr, jnp.eye(T, dtype=f32)).reshape(Cin * T, Cres * T)

    def padc(m, width):                         # zero-pad columns to `width`
        return jnp.concatenate([m, jnp.zeros((m.shape[0], width - m.shape[1]), f32)], axis=1)

    MRp = jnp.zeros((Cin * T, Wout), f32).at[:, col_idx].set(MR)
    w_tcn = jnp.concatenate([padc(M1, P), padc(M2, P), MRp], axis=1).astype(mxu_dtype)
    b_tcn = jnp.concatenate(
        [padc(jnp.repeat(b1, T)[None, :], P), padc(jnp.repeat(b2, T)[None, :], P),
         jnp.zeros((1, Wout), f32).at[0, col_idx].set(jnp.repeat(br, T))], axis=1)

    # --- BN1 (per Cout channel) on the padded (N, P) TCN output -----------------
    pool1 = jnp.zeros((P, P), f32).at[:F, :F].set(
        jnp.kron(jnp.eye(Cout, dtype=f32), jnp.ones((T, T), f32) / T))
    bn1_g = padc(jnp.repeat(p["bn1_g"], T)[None, :], P)
    bn1_b = padc(jnp.repeat(p["bn1_b"], T)[None, :], P)

    # --- GAT: [W_lin (head-major, 128-aligned) | alpha_dst cols | alpha_src cols] -
    ALPHA = 128                                 # padded width of the alpha-column segment
    w_gat = jnp.zeros((P, heads * P + ALPHA), f32)
    for h in range(heads):
        wh = p["gat_lin_w"][:, h * F:(h + 1) * F]                       # (F_in, F_out)
        w_gat = w_gat.at[:F, h * P:h * P + F].set(wh)
        w_gat = w_gat.at[:F, heads * P + h].set(wh @ p["gat_att_dst"][h])
        w_gat = w_gat.at[:F, heads * P + heads + h].set(wh @ p["gat_att_src"][h])
    w_gat = w_gat.astype(mxu_dtype)
    gat_b = jnp.zeros((1, Wout), f32).at[0, col_idx].set(p["gat_bias"])

    # --- BN2 (per Cres channel) on the padded (N, Wout) GAT output --------------
    pool2 = jnp.zeros((Wout, Wout), f32).at[col_idx[:, None], col_idx[None, :]].set(
        jnp.kron(jnp.eye(Cres, dtype=f32), jnp.ones((T, T), f32) / T))
    bn2_g = jnp.zeros((1, Wout), f32).at[0, col_idx].set(jnp.repeat(p["bn2_g"], T))
    bn2_b = jnp.zeros((1, Wout), f32).at[0, col_idx].set(jnp.repeat(p["bn2_b"], T))

    return {
        "w_tcn": w_tcn, "b_tcn": b_tcn,
        "bn1_pool": pool1, "bn1_g": bn1_g, "bn1_b": bn1_b,
        "w_gat": w_gat, "gat_b": gat_b,
        "bn2_pool": pool2, "bn2_g": bn2_g, "bn2_b": bn2_b,
    }


# ----------------------------------------------------------------------------
# Pure-JAX reference (mirrors the PyTorch module op-by-op) for validation
# ----------------------------------------------------------------------------
def reference_forward(p, X, adj, *, dilation, heads, concat, last):
    N, Cin, T = X.shape
    w1, b1, w2, b2 = p["conv1_w"], p["conv1_b"], p["conv2_w"], p["conv2_b"]
    Cout = w1.shape[0]
    factor = heads if concat else 1

    residual = jnp.einsum("oi,nit->not", p["res_w"], X) + p["res_b"][None, :, None]
    Xp = jnp.pad(X, ((0, 0), (0, 0), (dilation, dilation)))

    def conv(w, b):
        out = b[None, :, None]
        for k in range(3):
            out = out + jnp.einsum("oi,nit->not", w[:, :, k],
                                   Xp[:, :, k * dilation:k * dilation + T])
        return out

    x = jnp.tanh(conv(w1, b1)) * jax.nn.sigmoid(conv(w2, b2))

    def bn(x3, g, b):
        mean = jnp.mean(x3, axis=(0, 2), keepdims=True)
        var = jnp.mean((x3 - mean) ** 2, axis=(0, 2), keepdims=True)
        return (x3 - mean) * jax.lax.rsqrt(var + 1e-5) * g[None, :, None] + b[None, :, None]

    x = bn(x, p["bn1_g"], p["bn1_b"])
    F = Cout * T
    xf = x.reshape(N, F)
    xh = xf @ p["gat_lin_w"]
    outs = []
    for h in range(heads):
        xhh = xh[:, h * F:(h + 1) * F]
        a_src = xhh @ p["gat_att_src"][h]
        a_dst = xhh @ p["gat_att_dst"][h]
        e = a_dst[:, None] + a_src[None, :]
        e = jnp.where(e > 0, e, 0.2 * e)
        e = jnp.where(adj > 0, e, -1e30)
        m = jnp.max(e, axis=1, keepdims=True)
        pr = jnp.exp(e - m) * adj
        s = jnp.sum(pr, axis=1, keepdims=True)
        a = pr / jnp.where(s > 0, s, 1.0)
        outs.append(a @ xhh)
    g = jnp.concatenate(outs, axis=1) if concat else sum(outs) / heads
    g = g + p["gat_bias"][None, :]
    g = bn(g.reshape(N, Cout * factor, T), p["bn2_g"], p["bn2_b"])
    y = g + residual
    if not last:
        y = jnp.maximum(y, 0.0)
    return y


# ----------------------------------------------------------------------------
# Main
# ----------------------------------------------------------------------------
if __name__ == "__main__":
    key = jax.random.PRNGKey(0)
    k_x, k_p1, k_p2 = jax.random.split(key, 3)

    B, n_nodes, n_sequences = 4, 16, 8
    in_channels, out_channels, heads = 8, 8, 2

    # batch of graphs: (B, num_nodes, features, time) — per graph the torch layout
    X = jax.random.normal(k_x, (B, n_nodes, in_channels, n_sequences), jnp.float32)

    # deterministic directed edge_index: ring + skip-3 (every node has in-edges)
    src = jnp.concatenate([jnp.arange(n_nodes), jnp.arange(n_nodes)]).astype(jnp.int32)
    dst = jnp.concatenate([(jnp.arange(n_nodes) + 1) % n_nodes,
                           (jnp.arange(n_nodes) + 3) % n_nodes]).astype(jnp.int32)
    edge_index = jnp.stack([src, dst])
    adj = jnp.zeros((n_nodes, n_nodes), jnp.float32).at[edge_index[1], edge_index[0]].set(1.0)

    def run_layer(params, X_b, *, dilation, concat, last):
        ref = jnp.stack([reference_forward(params, X_b[b], adj, dilation=dilation,
                                           heads=heads, concat=concat, last=last)
                         for b in range(X_b.shape[0])])
        fwd = jax.jit(functools.partial(spatio_temporal_layer_gat_forward,
                                        out_channels=out_channels, heads=heads,
                                        concat=concat, last=last))
        y_keep = None
        # f32 MXU: strict numerical check; bf16 MXU: production mode, looser tolerance
        for name, dt, atol, rtol in (("f32", jnp.float32, 1e-2, 2e-2),
                                     ("bf16", jnp.bfloat16, 1.5e-1, 1.5e-1)):
            prep = prepare_params(params, n_sequences=n_sequences, dilation=dilation,
                                  heads=heads, concat=concat, mxu_dtype=dt)
            y = jax.block_until_ready(fwd(prep, X_b, adj))
            assert y.shape == ref.shape
            assert bool(jnp.all(jnp.isfinite(y)))
            err = float(jnp.max(jnp.abs(y - ref)))
            assert bool(jnp.allclose(y, ref, atol=atol, rtol=rtol)), (name, err)
            if name == "f32":
                y_keep = y
        return y_keep

    # --- layer A: hidden layer (concat=True, last=False, dilation=2) -----------
    pA = init_layer_params(k_p1, n_sequences=n_sequences, in_channels=in_channels,
                           out_channels=out_channels, heads=heads, concat=True)
    yA = run_layer(pA, X, dilation=2, concat=True, last=False)
    assert yA.shape == (B, n_nodes, out_channels * heads, n_sequences)

    # --- layer B: final layer (concat=False, last=True, dilation=1), chained ---
    pB = init_layer_params(k_p2, n_sequences=n_sequences, in_channels=out_channels * heads,
                           out_channels=out_channels, heads=heads, concat=False)
    yB = run_layer(pB, yA, dilation=1, concat=False, last=True)
    assert yB.shape == (B, n_nodes, out_channels, n_sequences)

    print("KERNEL_OK")
</pallas_src>

<mosaic_0001>
module attributes {stable_mosaic.version = 11 : i64} {
  func.func @_stl_gat_kernel(%arg0: i32, %arg1: memref<1x16x64xf32, #tpu.memory_space<vmem>>, %arg2: memref<64x512xf32, #tpu.memory_space<vmem>>, %arg3: memref<1x512xf32, #tpu.memory_space<vmem>>, %arg4: memref<128x128xf32, #tpu.memory_space<vmem>>, %arg5: memref<1x128xf32, #tpu.memory_space<vmem>>, %arg6: memref<1x128xf32, #tpu.memory_space<vmem>>, %arg7: memref<128x384xf32, #tpu.memory_space<vmem>>, %arg8: memref<1x256xf32, #tpu.memory_space<vmem>>, %arg9: memref<16x16xf32, #tpu.memory_space<vmem>>, %arg10: memref<256x256xf32, #tpu.memory_space<vmem>>, %arg11: memref<1x256xf32, #tpu.memory_space<vmem>>, %arg12: memref<1x256xf32, #tpu.memory_space<vmem>>, %arg13: memref<1x16x256xf32, #tpu.memory_space<vmem>>) attributes {dimension_semantics = [#tpu.dimension_semantics<parallel>], iteration_bounds = array<i64: 4>, scalar_prefetch = 0 : i64, scratch_operands = 0 : i64, tpu.core_type = #tpu.core_type<tc>, window_params = [{transform_indices = @transform_0, window_bounds = array<i64: 1, 16, 64>}, {pipeline_mode = #tpu.pipeline_mode<synchronous>, transform_indices = @transform_1, window_bounds = array<i64: 64, 512>}, {pipeline_mode = #tpu.pipeline_mode<synchronous>, transform_indices = @transform_2, window_bounds = array<i64: 1, 512>}, {pipeline_mode = #tpu.pipeline_mode<synchronous>, transform_indices = @transform_3, window_bounds = array<i64: 128, 128>}, {pipeline_mode = #tpu.pipeline_mode<synchronous>, transform_indices = @transform_4, window_bounds = array<i64: 1, 128>}, {pipeline_mode = #tpu.pipeline_mode<synchronous>, transform_indices = @transform_5, window_bounds = array<i64: 1, 128>}, {pipeline_mode = #tpu.pipeline_mode<synchronous>, transform_indices = @transform_6, window_bounds = array<i64: 128, 384>}, {pipeline_mode = #tpu.pipeline_mode<synchronous>, transform_indices = @transform_7, window_bounds = array<i64: 1, 256>}, {pipeline_mode = #tpu.pipeline_mode<synchronous>, transform_indices = @transform_8, window_bounds = array<i64: 16, 16>}, {pipeline_mode = #tpu.pipeline_mode<synchronous>, transform_indices = @transform_9, window_bounds = array<i64: 256, 256>}, {pipeline_mode = #tpu.pipeline_mode<synchronous>, transform_indices = @transform_10, window_bounds = array<i64: 1, 256>}, {pipeline_mode = #tpu.pipeline_mode<synchronous>, transform_indices = @transform_11, window_bounds = array<i64: 1, 256>}, {transform_indices = @transform_12, window_bounds = array<i64: 1, 16, 256>}]} {
    %c0 = arith.constant 0 : index
    %c0_0 = arith.constant 0 : index
    %c0_1 = arith.constant 0 : index
    %0 = vector.load %arg1[%c0, %c0_0, %c0_1] : memref<1x16x64xf32, #tpu.memory_space<vmem>>, vector<1x16x64xf32>
    %1 = vector.shape_cast %0 : vector<1x16x64xf32> to vector<16x64xf32>
    %c0_2 = arith.constant 0 : index
    %c0_3 = arith.constant 0 : index
    %2 = vector.load %arg2[%c0_2, %c0_3] : memref<64x512xf32, #tpu.memory_space<vmem>>, vector<64x512xf32>
    %cst = arith.constant dense<0.000000e+00> : vector<16x512xf32>
    %3 = tpu.matmul %1, %2, %cst {dimension_numbers = #tpu.dot_dimension_numbers<[1], [0], [0], [1], [0, 0, 1, 1], [], []>} : vector<16x64xf32>, vector<64x512xf32>, vector<16x512xf32> -> vector<16x512xf32>
    %c0_4 = arith.constant 0 : index
    %c0_5 = arith.constant 0 : index
    %4 = vector.load %arg3[%c0_4, %c0_5] : memref<1x512xf32, #tpu.memory_space<vmem>>, vector<1x512xf32>
    %5 = vector.broadcast %4 : vector<1x512xf32> to vector<16x512xf32>
    %6 = arith.addf %3, %5 : vector<16x512xf32>
    %7 = vector.extract_strided_slice %6 {offsets = [0, 0], sizes = [16, 128], strides = [1, 1]} : vector<16x512xf32> to vector<16x128xf32>
    %8 = math.tanh %7 : vector<16x128xf32>
    %9 = vector.extract_strided_slice %6 {offsets = [0, 128], sizes = [16, 128], strides = [1, 1]} : vector<16x512xf32> to vector<16x128xf32>
    %10 = arith.negf %9 : vector<16x128xf32>
    %11 = math.exp %10 : vector<16x128xf32>
    %cst_6 = arith.constant 1.000000e+00 : f32
    %12 = vector.broadcast %cst_6 : f32 to vector<16x128xf32>
    %13 = arith.addf %12, %11 : vector<16x128xf32>
    %14 = arith.divf %12, %13 : vector<16x128xf32>
    %15 = arith.mulf %8, %14 : vector<16x128xf32>
    %16 = vector.extract_strided_slice %6 {offsets = [0, 256], sizes = [16, 256], strides = [1, 1]} : vector<16x512xf32> to vector<16x256xf32>
    %c0_7 = arith.constant 0 : index
    %c0_8 = arith.constant 0 : index
    %17 = vector.load %arg4[%c0_7, %c0_8] : memref<128x128xf32, #tpu.memory_space<vmem>>, vector<128x128xf32>
    %c0_9 = arith.constant 0 : index
    %c0_10 = arith.constant 0 : index
    %18 = vector.load %arg5[%c0_9, %c0_10] : memref<1x128xf32, #tpu.memory_space<vmem>>, vector<1x128xf32>
    %c0_11 = arith.constant 0 : index
    %c0_12 = arith.constant 0 : index
    %19 = vector.load %arg6[%c0_11, %c0_12] : memref<1x128xf32, #tpu.memory_space<vmem>>, vector<1x128xf32>
    %cst_13 = arith.constant dense<0.000000e+00> : vector<128xf32>
    %20 = vector.multi_reduction <add>, %15, %cst_13 [0] : vector<16x128xf32> to vector<128xf32>
    %21 = vector.shape_cast %20 : vector<128xf32> to vector<1x128xf32>
    %cst_14 = arith.constant 1.600000e+01 : f32
    %22 = vector.broadcast %cst_14 : f32 to vector<1x128xf32>
    %23 = arith.divf %21, %22 : vector<1x128xf32>
    %24 = arith.mulf %15, %15 : vector<16x128xf32>
    %cst_15 = arith.constant dense<0.000000e+00> : vector<128xf32>
    %25 = vector.multi_reduction <add>, %24, %cst_15 [0] : vector<16x128xf32> to vector<128xf32>
    %26 = vector.shape_cast %25 : vector<128xf32> to vector<1x128xf32>
    %cst_16 = arith.constant 1.600000e+01 : f32
    %27 = vector.broadcast %cst_16 : f32 to vector<1x128xf32>
    %28 = arith.divf %26, %27 : vector<1x128xf32>
    %29 = tpu.concatenate %23, %28 in 0 : vector<1x128xf32>, vector<1x128xf32> -> vector<2x128xf32>
    %cst_17 = arith.constant dense<0.000000e+00> : vector<2x128xf32>
    %30 = tpu.matmul %29, %17, %cst_17 {dimension_numbers = #tpu.dot_dimension_numbers<[1], [0], [0], [1], [0, 0, 1, 1], [], []>} : vector<2x128xf32>, vector<128x128xf32>, vector<2x128xf32> -> vector<2x128xf32>
    %31 = vector.extract_strided_slice %30 {offsets = [0, 0], sizes = [1, 128], strides = [1, 1]} : vector<2x128xf32> to vector<1x128xf32>
    %32 = vector.extract_strided_slice %30 {offsets = [1, 0], sizes = [1, 128], strides = [1, 1]} : vector<2x128xf32> to vector<1x128xf32>
    %33 = arith.mulf %31, %31 : vector<1x128xf32>
    %34 = arith.subf %32, %33 : vector<1x128xf32>
    %cst_18 = arith.constant 0.000000e+00 : f32
    %35 = vector.broadcast %cst_18 : f32 to vector<1x128xf32>
    %36 = arith.maximumf %34, %35 : vector<1x128xf32>
    %37 = vector.broadcast %31 : vector<1x128xf32> to vector<16x128xf32>
    %38 = arith.subf %15, %37 : vector<16x128xf32>
    %cst_19 = arith.constant 9.99999974E-6 : f32
    %39 = vector.broadcast %cst_19 : f32 to vector<1x128xf32>
    %40 = arith.addf %36, %39 : vector<1x128xf32>
    %41 = math.rsqrt %40 : vector<1x128xf32>
    %42 = vector.broadcast %41 : vector<1x128xf32> to vector<16x128xf32>
    %43 = arith.mulf %38, %42 : vector<16x128xf32>
    %44 = vector.broadcast %18 : vector<1x128xf32> to vector<16x128xf32>
    %45 = arith.mulf %43, %44 : vector<16x128xf32>
    %46 = vector.broadcast %19 : vector<1x128xf32> to vector<16x128xf32>
    %47 = arith.addf %45, %46 : vector<16x128xf32>
    %c0_20 = arith.constant 0 : index
    %c0_21 = arith.constant 0 : index
    %48 = vector.load %arg7[%c0_20, %c0_21] : memref<128x384xf32, #tpu.memory_space<vmem>>, vector<128x384xf32>
    %cst_22 = arith.constant dense<0.000000e+00> : vector<16x384xf32>
    %49 = tpu.matmul %47, %48, %cst_22 {dimension_numbers = #tpu.dot_dimension_numbers<[1], [0], [0], [1], [0, 0, 1, 1], [], []>} : vector<16x128xf32>, vector<128x384xf32>, vector<16x384xf32> -> vector<16x384xf32>
    %c0_23 = arith.constant 0 : index
    %c0_24 = arith.constant 0 : index
    %50 = vector.load %arg9[%c0_23, %c0_24] : memref<16x16xf32, #tpu.memory_space<vmem>>, vector<16x16xf32>
    %51 = vector.extract_strided_slice %49 {offsets = [0, 256], sizes = [16, 128], strides = [1, 1]} : vector<16x384xf32> to vector<16x128xf32>
    %52 = tpu.transpose %51, [1, 0] : vector<16x128xf32> -> vector<128x16xf32>
    %53 = vector.extract_strided_slice %49 {offsets = [0, 0], sizes = [16, 128], strides = [1, 1]} : vector<16x384xf32> to vector<16x128xf32>
    %54 = vector.extract_strided_slice %49 {offsets = [0, 256], sizes = [16, 1], strides = [1, 1]} : vector<16x384xf32> to vector<16x1xf32>
    %55 = vector.extract_strided_slice %52 {offsets = [2, 0], sizes = [1, 16], strides = [1, 1]} : vector<128x16xf32> to vector<1x16xf32>
    %56 = vector.broadcast %54 : vector<16x1xf32> to vector<16x16xf32>
    %57 = vector.broadcast %55 : vector<1x16xf32> to vector<16x16xf32>
    %58 = arith.addf %56, %57 : vector<16x16xf32>
    %cst_25 = arith.constant 0.000000e+00 : f32
    %59 = vector.broadcast %cst_25 : f32 to vector<16x16xf32>
    %60 = arith.cmpf ogt, %58, %59 : vector<16x16xf32>
    %cst_26 = arith.constant 2.000000e-01 : f32
    %61 = vector.broadcast %cst_26 : f32 to vector<16x16xf32>
    %62 = arith.mulf %61, %58 : vector<16x16xf32>
    %63 = arith.select %60, %58, %62 : vector<16x16xi1>, vector<16x16xf32>
    %cst_27 = arith.constant 0.000000e+00 : f32
    %64 = vector.broadcast %cst_27 : f32 to vector<16x16xf32>
    %65 = arith.cmpf ogt, %50, %64 : vector<16x16xf32>
    %cst_28 = arith.constant -1.000000e+30 : f32
    %66 = vector.broadcast %cst_28 : f32 to vector<16x16xf32>
    %67 = arith.select %65, %63, %66 : vector<16x16xi1>, vector<16x16xf32>
    %cst_29 = arith.constant dense<0xFF800000> : vector<16xf32>
    %68 = vector.multi_reduction <maximumf>, %67, %cst_29 [1] : vector<16x16xf32> to vector<16xf32>
    %69 = vector.shape_cast %68 : vector<16xf32> to vector<16x1xf32>
    %cst_30 = arith.constant 0.000000e+00 : f32
    %70 = vector.broadcast %cst_30 : f32 to vector<16x16xf32>
    %71 = arith.cmpf ogt, %50, %70 : vector<16x16xf32>
    %72 = vector.broadcast %69 : vector<16x1xf32> to vector<16x16xf32>
    %73 = arith.subf %67, %72 : vector<16x16xf32>
    %74 = math.exp %73 : vector<16x16xf32>
    %cst_31 = arith.constant 0.000000e+00 : f32
    %75 = vector.broadcast %cst_31 : f32 to vector<16x16xf32>
    %76 = arith.select %71, %74, %75 : vector<16x16xi1>, vector<16x16xf32>
    %cst_32 = arith.constant dense<0.000000e+00> : vector<16xf32>
    %77 = vector.multi_reduction <add>, %76, %cst_32 [1] : vector<16x16xf32> to vector<16xf32>
    %78 = vector.shape_cast %77 : vector<16xf32> to vector<16x1xf32>
    %cst_33 = arith.constant 0.000000e+00 : f32
    %79 = vector.broadcast %cst_33 : f32 to vector<16x1xf32>
    %80 = arith.cmpf ogt, %78, %79 : vector<16x1xf32>
    %cst_34 = arith.constant 1.000000e+00 : f32
    %81 = vector.broadcast %cst_34 : f32 to vector<16x1xf32>
    %82 = arith.select %80, %78, %81 : vector<16x1xi1>, vector<16x1xf32>
    %83 = tpu.reciprocal %82 {approx = true} : vector<16x1xf32> -> vector<16x1xf32>
    %84 = vector.broadcast %83 : vector<16x1xf32> to vector<16x16xf32>
    %85 = arith.mulf %76, %84 : vector<16x16xf32>
    %cst_35 = arith.constant dense<0.000000e+00> : vector<16x128xf32>
    %86 = tpu.matmul %85, %53, %cst_35 {dimension_numbers = #tpu.dot_dimension_numbers<[1], [0], [0], [1], [0, 0, 1, 1], [], []>} : vector<16x16xf32>, vector<16x128xf32>, vector<16x128xf32> -> vector<16x128xf32>
    %87 = vector.extract_strided_slice %49 {offsets = [0, 128], sizes = [16, 128], strides = [1, 1]} : vector<16x384xf32> to vector<16x128xf32>
    %88 = vector.extract_strided_slice %49 {offsets = [0, 257], sizes = [16, 1], strides = [1, 1]} : vector<16x384xf32> to vector<16x1xf32>
    %89 = vector.extract_strided_slice %52 {offsets = [3, 0], sizes = [1, 16], strides = [1, 1]} : vector<128x16xf32> to vector<1x16xf32>
    %90 = vector.broadcast %88 : vector<16x1xf32> to vector<16x16xf32>
    %91 = vector.broadcast %89 : vector<1x16xf32> to vector<16x16xf32>
    %92 = arith.addf %90, %91 : vector<16x16xf32>
    %cst_36 = arith.constant 0.000000e+00 : f32
    %93 = vector.broadcast %cst_36 : f32 to vector<16x16xf32>
    %94 = arith.cmpf ogt, %92, %93 : vector<16x16xf32>
    %cst_37 = arith.constant 2.000000e-01 : f32
    %95 = vector.broadcast %cst_37 : f32 to vector<16x16xf32>
    %96 = arith.mulf %95, %92 : vector<16x16xf32>
    %97 = arith.select %94, %92, %96 : vector<16x16xi1>, vector<16x16xf32>
    %cst_38 = arith.constant 0.000000e+00 : f32
    %98 = vector.broadcast %cst_38 : f32 to vector<16x16xf32>
    %99 = arith.cmpf ogt, %50, %98 : vector<16x16xf32>
    %cst_39 = arith.constant -1.000000e+30 : f32
    %100 = vector.broadcast %cst_39 : f32 to vector<16x16xf32>
    %101 = arith.select %99, %97, %100 : vector<16x16xi1>, vector<16x16xf32>
    %cst_40 = arith.constant dense<0xFF800000> : vector<16xf32>
    %102 = vector.multi_reduction <maximumf>, %101, %cst_40 [1] : vector<16x16xf32> to vector<16xf32>
    %103 = vector.shape_cast %102 : vector<16xf32> to vector<16x1xf32>
    %cst_41 = arith.constant 0.000000e+00 : f32
    %104 = vector.broadcast %cst_41 : f32 to vector<16x16xf32>
    %105 = arith.cmpf ogt, %50, %104 : vector<16x16xf32>
    %106 = vector.broadcast %103 : vector<16x1xf32> to vector<16x16xf32>
    %107 = arith.subf %101, %106 : vector<16x16xf32>
    %108 = math.exp %107 : vector<16x16xf32>
    %cst_42 = arith.constant 0.000000e+00 : f32
    %109 = vector.broadcast %cst_42 : f32 to vector<16x16xf32>
    %110 = arith.select %105, %108, %109 : vector<16x16xi1>, vector<16x16xf32>
    %cst_43 = arith.constant dense<0.000000e+00> : vector<16xf32>
    %111 = vector.multi_reduction <add>, %110, %cst_43 [1] : vector<16x16xf32> to vector<16xf32>
    %112 = vector.shape_cast %111 : vector<16xf32> to vector<16x1xf32>
    %cst_44 = arith.constant 0.000000e+00 : f32
    %113 = vector.broadcast %cst_44 : f32 to vector<16x1xf32>
    %114 = arith.cmpf ogt, %112, %113 : vector<16x1xf32>
    %cst_45 = arith.constant 1.000000e+00 : f32
    %115 = vector.broadcast %cst_45 : f32 to vector<16x1xf32>
    %116 = arith.select %114, %112, %115 : vector<16x1xi1>, vector<16x1xf32>
    %117 = tpu.reciprocal %116 {approx = true} : vector<16x1xf32> -> vector<16x1xf32>
    %118 = vector.broadcast %117 : vector<16x1xf32> to vector<16x16xf32>
    %119 = arith.mulf %110, %118 : vector<16x16xf32>
    %cst_46 = arith.constant dense<0.000000e+00> : vector<16x128xf32>
    %120 = tpu.matmul %119, %87, %cst_46 {dimension_numbers = #tpu.dot_dimension_numbers<[1], [0], [0], [1], [0, 0, 1, 1], [], []>} : vector<16x16xf32>, vector<16x128xf32>, vector<16x128xf32> -> vector<16x128xf32>
    %121 = tpu.concatenate %86, %120 in 1 : vector<16x128xf32>, vector<16x128xf32> -> vector<16x256xf32>
    %c0_47 = arith.constant 0 : index
    %c0_48 = arith.constant 0 : index
    %122 = vector.load %arg8[%c0_47, %c0_48] : memref<1x256xf32, #tpu.memory_space<vmem>>, vector<1x256xf32>
    %123 = vector.broadcast %122 : vector<1x256xf32> to vector<16x256xf32>
    %124 = arith.addf %121, %123 : vector<16x256xf32>
    %c0_49 = arith.constant 0 : index
    %c0_50 = arith.constant 0 : index
    %125 = vector.load %arg10[%c0_49, %c0_50] : memref<256x256xf32, #tpu.memory_space<vmem>>, vector<256x256xf32>
    %c0_51 = arith.constant 0 : index
    %c0_52 = arith.constant 0 : index
    %126 = vector.load %arg11[%c0_51, %c0_52] : memref<1x256xf32, #tpu.memory_space<vmem>>, vector<1x256xf32>
    %c0_53 = arith.constant 0 : index
    %c0_54 = arith.constant 0 : index
    %127 = vector.load %arg12[%c0_53, %c0_54] : memref<1x256xf32, #tpu.memory_space<vmem>>, vector<1x256xf32>
    %cst_55 = arith.constant dense<0.000000e+00> : vector<256xf32>
    %128 = vector.multi_reduction <add>, %124, %cst_55 [0] : vector<16x256xf32> to vector<256xf32>
    %129 = vector.shape_cast %128 : vector<256xf32> to vector<1x256xf32>
    %cst_56 = arith.constant 1.600000e+01 : f32
    %130 = vector.broadcast %cst_56 : f32 to vector<1x256xf32>
    %131 = arith.divf %129, %130 : vector<1x256xf32>
    %132 = arith.mulf %124, %124 : vector<16x256xf32>
    %cst_57 = arith.constant dense<0.000000e+00> : vector<256xf32>
    %133 = vector.multi_reduction <add>, %132, %cst_57 [0] : vector<16x256xf32> to vector<256xf32>
    %134 = vector.shape_cast %133 : vector<256xf32> to vector<1x256xf32>
    %cst_58 = arith.constant 1.600000e+01 : f32
    %135 = vector.broadcast %cst_58 : f32 to vector<1x256xf32>
    %136 = arith.divf %134, %135 : vector<1x256xf32>
    %137 = tpu.concatenate %131, %136 in 0 : vector<1x256xf32>, vector<1x256xf32> -> vector<2x256xf32>
    %cst_59 = arith.constant dense<0.000000e+00> : vector<2x256xf32>
    %138 = tpu.matmul %137, %125, %cst_59 {dimension_numbers = #tpu.dot_dimension_numbers<[1], [0], [0], [1], [0, 0, 1, 1], [], []>} : vector<2x256xf32>, vector<256x256xf32>, vector<2x256xf32> -> vector<2x256xf32>
    %139 = vector.extract_strided_slice %138 {offsets = [0, 0], sizes = [1, 256], strides = [1, 1]} : vector<2x256xf32> to vector<1x256xf32>
    %140 = vector.extract_strided_slice %138 {offsets = [1, 0], sizes = [1, 256], strides = [1, 1]} : vector<2x256xf32> to vector<1x256xf32>
    %141 = arith.mulf %139, %139 : vector<1x256xf32>
    %142 = arith.subf %140, %141 : vector<1x256xf32>
    %cst_60 = arith.constant 0.000000e+00 : f32
    %143 = vector.broadcast %cst_60 : f32 to vector<1x256xf32>
    %144 = arith.maximumf %142, %143 : vector<1x256xf32>
    %145 = vector.broadcast %139 : vector<1x256xf32> to vector<16x256xf32>
    %146 = arith.subf %124, %145 : vector<16x256xf32>
    %cst_61 = arith.constant 9.99999974E-6 : f32
    %147 = vector.broadcast %cst_61 : f32 to vector<1x256xf32>
    %148 = arith.addf %144, %147 : vector<1x256xf32>
    %149 = math.rsqrt %148 : vector<1x256xf32>
    %150 = vector.broadcast %149 : vector<1x256xf32> to vector<16x256xf32>
    %151 = arith.mulf %146, %150 : vector<16x256xf32>
    %152 = vector.broadcast %126 : vector<1x256xf32> to vector<16x256xf32>
    %153 = arith.mulf %151, %152 : vector<16x256xf32>
    %154 = vector.broadcast %127 : vector<1x256xf32> to vector<16x256xf32>
    %155 = arith.addf %153, %154 : vector<16x256xf32>
    %156 = arith.addf %155, %16 : vector<16x256xf32>
    %cst_62 = arith.constant 0.000000e+00 : f32
    %157 = vector.broadcast %cst_62 : f32 to vector<16x256xf32>
    %158 = arith.maximumf %156, %157 : vector<16x256xf32>
    %c0_63 = arith.constant 0 : index
    %c0_64 = arith.constant 0 : index
    %c0_65 = arith.constant 0 : index
    %159 = vector.load %arg13[%c0_63, %c0_64, %c0_65] : memref<1x16x256xf32, #tpu.memory_space<vmem>>, vector<1x16x256xf32>
    %160 = vector.shape_cast %159 : vector<1x16x256xf32> to vector<16x256xf32>
    %161 = vector.shape_cast %158 : vector<16x256xf32> to vector<1x16x256xf32>
    tpu.vector_store %arg13[%c0_63, %c0_64, %c0_65], %161 {strides = array<i32>} : memref<1x16x256xf32, #tpu.memory_space<vmem>>, vector<1x16x256xf32>,
    return
  }
  func.func @transform_0(%arg0: i32) -> (i32, i32, i32) {
    %c0_i32 = arith.constant 0 : i32
    %c0_i32_0 = arith.constant 0 : i32
    %c0_i32_1 = arith.constant 0 : i32
    return %arg0, %c0_i32, %c0_i32_0 : i32, i32, i32
  }
  func.func @transform_1(%arg0: i32) -> (i32, i32) {
    %c0_i32 = arith.constant 0 : i32
    %c0_i32_0 = arith.constant 0 : i32
    %c0_i32_1 = arith.constant 0 : i32
    return %c0_i32, %c0_i32_0 : i32, i32
  }
  func.func @transform_2(%arg0: i32) -> (i32, i32) {
    %c0_i32 = arith.constant 0 : i32
    %c0_i32_0 = arith.constant 0 : i32
    %c0_i32_1 = arith.constant 0 : i32
    return %c0_i32, %c0_i32_0 : i32, i32
  }
  func.func @transform_3(%arg0: i32) -> (i32, i32) {
    %c0_i32 = arith.constant 0 : i32
    %c0_i32_0 = arith.constant 0 : i32
    %c0_i32_1 = arith.constant 0 : i32
    return %c0_i32, %c0_i32_0 : i32, i32
  }
  func.func @transform_4(%arg0: i32) -> (i32, i32) {
    %c0_i32 = arith.constant 0 : i32
    %c0_i32_0 = arith.constant 0 : i32
    %c0_i32_1 = arith.constant 0 : i32
    return %c0_i32, %c0_i32_0 : i32, i32
  }
  func.func @transform_5(%arg0: i32) -> (i32, i32) {
    %c0_i32 = arith.constant 0 : i32
    %c0_i32_0 = arith.constant 0 : i32
    %c0_i32_1 = arith.constant 0 : i32
    return %c0_i32, %c0_i32_0 : i32, i32
  }
  func.func @transform_6(%arg0: i32) -> (i32, i32) {
    %c0_i32 = arith.constant 0 : i32
    %c0_i32_0 = arith.constant 0 : i32
    %c0_i32_1 = arith.constant 0 : i32
    return %c0_i32, %c0_i32_0 : i32, i32
  }
  func.func @transform_7(%arg0: i32) -> (i32, i32) {
    %c0_i32 = arith.constant 0 : i32
    %c0_i32_0 = arith.constant 0 : i32
    %c0_i32_1 = arith.constant 0 : i32
    return %c0_i32, %c0_i32_0 : i32, i32
  }
  func.func @transform_8(%arg0: i32) -> (i32, i32) {
    %c0_i32 = arith.constant 0 : i32
    %c0_i32_0 = arith.constant 0 : i32
    %c0_i32_1 = arith.constant 0 : i32
    return %c0_i32, %c0_i32_0 : i32, i32
  }
  func.func @transform_9(%arg0: i32) -> (i32, i32) {
    %c0_i32 = arith.constant 0 : i32
    %c0_i32_0 = arith.constant 0 : i32
    %c0_i32_1 = arith.constant 0 : i32
    return %c0_i32, %c0_i32_0 : i32, i32
  }
  func.func @transform_10(%arg0: i32) -> (i32, i32) {
    %c0_i32 = arith.constant 0 : i32
    %c0_i32_0 = arith.constant 0 : i32
    %c0_i32_1 = arith.constant 0 : i32
    return %c0_i32, %c0_i32_0 : i32, i32
  }
  func.func @transform_11(%arg0: i32) -> (i32, i32) {
    %c0_i32 = arith.constant 0 : i32
    %c0_i32_0 = arith.constant 0 : i32
    %c0_i32_1 = arith.constant 0 : i32
    return %c0_i32, %c0_i32_0 : i32, i32
  }
  func.func @transform_12(%arg0: i32) -> (i32, i32, i32) {
    %c0_i32 = arith.constant 0 : i32
    %c0_i32_0 = arith.constant 0 : i32
    %c0_i32_1 = arith.constant 0 : i32
    return %arg0, %c0_i32, %c0_i32_0 : i32, i32, i32
  }
}

</mosaic_0001>

<llo_original>
// kernel: spatio_temporal_layer_gat_forward.1
$region0: #{spatio_temporal_layer_gat_forward.1}
  #allocation0 [shape = 'u32[]', space=smem, size = 0x4, offset = 0x4, fixed_abs, tag = 'smem constant byte address 0x4 - core index']
  #allocation1 [shape = 'u32[144,128]{1,0:T(1,128)}', space=vmem, size = 0x12000, scoped, tag = 'internal scratch']
  %s0 = inlined_call_operand.vmem [shape: f32[4,16,64], index: 0, kind: input, shape index: {}]
  %s1 = inlined_call_operand.vmem [shape: f32[64,512], index: 1, kind: input, shape index: {}]
  %s2 = inlined_call_operand.vmem [shape: f32[1,512], index: 2, kind: input, shape index: {}]
  %s3 = inlined_call_operand.hbm [shape: f32[128,128], index: 3, kind: input, shape index: {}]
  %s4 = inlined_call_operand.vmem [shape: f32[1,128], index: 4, kind: input, shape index: {}]
  %s5 = inlined_call_operand.vmem [shape: f32[1,128], index: 5, kind: input, shape index: {}]
  %s6 = inlined_call_operand.hbm [shape: f32[128,384], index: 6, kind: input, shape index: {}]
  %s7 = inlined_call_operand.vmem [shape: f32[1,256], index: 7, kind: input, shape index: {}]
  %s8 = inlined_call_operand.vmem [shape: f32[16,16], index: 8, kind: input, shape index: {}]
  %s9 = inlined_call_operand.hbm [shape: f32[256,256], index: 9, kind: input, shape index: {}]
  %s10 = inlined_call_operand.vmem [shape: f32[1,256], index: 10, kind: input, shape index: {}]
  %s11 = inlined_call_operand.vmem [shape: f32[1,256], index: 11, kind: input, shape index: {}]
  %s12 = inlined_call_operand.vmem [shape: f32[4,16,256], index: 12, kind: output, shape index: {}]
  %s13 = sld [smem:[#allocation0]]
  $region93: #{spatio_temporal_layer_gat_forward.1} parent=0
    _
  %s15 = ssub.s32 1, %s13
  %s16 = scalar_select 0, %s15, %s13
  $region1: #{spatio_temporal_layer_gat_forward.1} parent=0
    #allocation2 [shape = 'u8[65536]{0}', space=vmem, size = 0x10000, scoped, tag = 'input window, operand 3, single buffered']
    #allocation3 [shape = 's32[2]{0}', space=sflag, size = 0x8, scoped, tag = 'scoped memory for spatio_temporal_layer_gat_forward.1']
    #allocation4 [shape = 'u8[196608]{0}', space=vmem, size = 0x30000, scoped, tag = 'input window, operand 6, single buffered']
    #allocation5 [shape = 's32[1]{0}', space=sflag, size = 0x4, scoped, tag = 'scoped memory for spatio_temporal_layer_gat_forward.1']
    #allocation6 [shape = 'u8[262144]{0}', space=vmem, size = 0x40000, scoped, tag = 'input window, operand 9, single buffered']
    %17 = vsyncpa [#allocation3], 0
    %18 = vsyncpa [#allocation5], 0
    loop: start=0, step=1, limit=6
    $region2: #{spatio_temporal_layer_gat_forward.1} parent=1 // loop_pre_header
      _
    $region3: #{spatio_temporal_layer_gat_forward.1} parent=1 // loop_header
      %s20 = sphi 0, %s24
      %p21 = scmp.ge.s32.totalorder %s20, 6
      %s30 = sphi 0, %s32
      %s33 = sphi 0, %s30
      %s34 = sphi 0, %s33
      %s50 = sphi 0, %s34
      %s54 = sphi 0, %s54
      %s56 = sphi 0, %s54
      %s57 = sphi 0, %s56
      %s71 = sphi 0, %s57
      %s75 = sphi 0, %s75
      %s77 = sphi 0, %s75
      %s78 = sphi 0, %s77
      %s92 = sphi 0, %s78
      %s96 = sphi 0, %s96
      %s98 = sphi 0, %s96
      %s99 = sphi 0, %s98
      %s113 = sphi 0, %s99
      %s117 = sphi 0, %s117
      %s119 = sphi 0, %s117
      %s120 = sphi 0, %s119
      %s134 = sphi 0, %s120
      %s138 = sphi 0, %s138
      %s140 = sphi 0, %s138
      %s141 = sphi 0, %s140
      %s155 = sphi 0, %s141
      %s159 = sphi 0, %s159
      %s161 = sphi 0, %s159
      %s162 = sphi 0, %s161
      %s176 = sphi 0, %s162
      %s180 = sphi 0, %s180
      %s182 = sphi 0, %s180
      %s183 = sphi 0, %s182
      %s197 = sphi 0, %s183
      %s201 = sphi 0, %s201
      %s203 = sphi 0, %s201
      %s204 = sphi 0, %s203
      %s218 = sphi 0, %s204
      %s222 = sphi 0, %s222
      %s224 = sphi 0, %s222
      %s225 = sphi 0, %s224
      %s239 = sphi 0, %s225
      %s243 = sphi 0, %s243
      %s245 = sphi 0, %s243
      %s246 = sphi 0, %s245
      %s260 = sphi 0, %s246
      %s264 = sphi 0, %s264
      %s266 = sphi 0, %s264
      %s267 = sphi 0, %s266
      %s281 = sphi 0, %s267
      %s287 = sphi 0, %s289
      %s290 = sphi 0, %s287
      %s291 = sphi 0, %s290
      %s307 = sphi 0, %s291
    $region4: #{spatio_temporal_layer_gat_forward.1} parent=1 // loop_header_branch
      %23 = sbr.rel (%p21) target = $region8
    $region5: #{spatio_temporal_layer_gat_forward.1} parent=1 // loop_body
      %s25 = ssub.s32 %s20, 1
      %s26 = ssub.s32 %s20, 2
      %s27 = sadd.s32 %s20, 1
      %s28 = ssub.s32 %s20, %s27
      %p29 = scmp.eq.s32.totalorder %s28, 0
      %s31 = sadd.s32 %s30, 1
      %s32 = scalar_select %p29, %s30, %s31
      %p35 = pneg %p29
      %p36 = scmp.eq.s32.totalorder %s20, 3
      %p37 = por %p35, %p36
      %p38 = scmp.ne.s32.totalorder %s30, %s33
      %p39 = scmp.eq.s32.totalorder %s20, 0
      %p40 = por %p38, %p39
      %p41 = scmp.ne.s32.totalorder %s30, %s33
      %p42 = scmp.eq.s32.totalorder %s25, 3
      %p43 = por %p41, %p42
      %p44 = scmp.ne.s32.totalorder %s33, %s34
      %p45 = scmp.eq.s32.totalorder %s25, 0
      %p46 = por %p44, %p45
      %p47 = scmp.ne.s32.totalorder %s33, %s34
      %p48 = scmp.eq.s32.totalorder %s26, 3
      %p49 = por %p47, %p48
      %p51 = scmp.ne.s32.totalorder %s34, %s50
      %p52 = scmp.eq.s32.totalorder %s26, 0
      %p53 = por %p51, %p52
      %s55 = sadd.s32 %s54, 1
      %p58 = scmp.eq.s32.totalorder %s20, 3
      %p59 = scmp.ne.s32.totalorder %s54, %s56
      %p60 = scmp.eq.s32.totalorder %s20, 0
      %p61 = por %p59, %p60
      %p62 = scmp.ne.s32.totalorder %s54, %s56
      %p63 = scmp.eq.s32.totalorder %s25, 3
      %p64 = por %p62, %p63
      %p65 = scmp.ne.s32.totalorder %s56, %s57
      %p66 = scmp.eq.s32.totalorder %s25, 0
      %p67 = por %p65, %p66
      %p68 = scmp.ne.s32.totalorder %s56, %s57
      %p69 = scmp.eq.s32.totalorder %s26, 3
      %p70 = por %p68, %p69
      %p72 = scmp.ne.s32.totalorder %s57, %s71
      %p73 = scmp.eq.s32.totalorder %s26, 0
      %p74 = por %p72, %p73
      %s76 = sadd.s32 %s75, 1
      %p79 = scmp.eq.s32.totalorder %s20, 3
      %p80 = scmp.ne.s32.totalorder %s75, %s77
      %p81 = scmp.eq.s32.totalorder %s20, 0
      %p82 = por %p80, %p81
      %p83 = scmp.ne.s32.totalorder %s75, %s77
      %p84 = scmp.eq.s32.totalorder %s25, 3
      %p85 = por %p83, %p84
      %p86 = scmp.ne.s32.totalorder %s77, %s78
      %p87 = scmp.eq.s32.totalorder %s25, 0
      %p88 = por %p86, %p87
      %p89 = scmp.ne.s32.totalorder %s77, %s78
      %p90 = scmp.eq.s32.totalorder %s26, 3
      %p91 = por %p89, %p90
      %p93 = scmp.ne.s32.totalorder %s78, %s92
      %p94 = scmp.eq.s32.totalorder %s26, 0
      %p95 = por %p93, %p94
      %s97 = sadd.s32 %s96, 1
      %p100 = scmp.eq.s32.totalorder %s20, 3
      %p101 = scmp.ne.s32.totalorder %s96, %s98
      %p102 = scmp.eq.s32.totalorder %s20, 0
      %p103 = por %p101, %p102
      %p104 = scmp.ne.s32.totalorder %s96, %s98
      %p105 = scmp.eq.s32.totalorder %s25, 3
      %p106 = por %p104, %p105
      %p107 = scmp.ne.s32.totalorder %s98, %s99
      %p108 = scmp.eq.s32.totalorder %s25, 0
      %p109 = por %p107, %p108
      %p110 = scmp.ne.s32.totalorder %s98, %s99
      %p111 = scmp.eq.s32.totalorder %s26, 3
      %p112 = por %p110, %p111
      %p114 = scmp.ne.s32.totalorder %s99, %s113
      %p115 = scmp.eq.s32.totalorder %s26, 0
      %p116 = por %p114, %p115
      %s118 = sadd.s32 %s117, 1
      %p121 = scmp.eq.s32.totalorder %s20, 3
      %p122 = scmp.ne.s32.totalorder %s117, %s119
      %p123 = scmp.eq.s32.totalorder %s20, 0
      %p124 = por %p122, %p123
      %p125 = scmp.ne.s32.totalorder %s117, %s119
      %p126 = scmp.eq.s32.totalorder %s25, 3
      %p127 = por %p125, %p126
      %p128 = scmp.ne.s32.totalorder %s119, %s120
      %p129 = scmp.eq.s32.totalorder %s25, 0
      %p130 = por %p128, %p129
      %p131 = scmp.ne.s32.totalorder %s119, %s120
      %p132 = scmp.eq.s32.totalorder %s26, 3
      %p133 = por %p131, %p132
      %p135 = scmp.ne.s32.totalorder %s120, %s134
      %p136 = scmp.eq.s32.totalorder %s26, 0
      %p137 = por %p135, %p136
      %s139 = sadd.s32 %s138, 1
      %p142 = scmp.eq.s32.totalorder %s20, 3
      %p143 = scmp.ne.s32.totalorder %s138, %s140
      %p144 = scmp.eq.s32.totalorder %s20, 0
      %p145 = por %p143, %p144
      %p146 = scmp.ne.s32.totalorder %s138, %s140
      %p147 = scmp.eq.s32.totalorder %s25, 3
      %p148 = por %p146, %p147
      %p149 = scmp.ne.s32.totalorder %s140, %s141
      %p150 = scmp.eq.s32.totalorder %s25, 0
      %p151 = por %p149, %p150
      %p152 = scmp.ne.s32.totalorder %s140, %s141
      %p153 = scmp.eq.s32.totalorder %s26, 3
      %p154 = por %p152, %p153
      %p156 = scmp.ne.s32.totalorder %s141, %s155
      %p157 = scmp.eq.s32.totalorder %s26, 0
      %p158 = por %p156, %p157
      %s160 = sadd.s32 %s159, 1
      %p163 = scmp.eq.s32.totalorder %s20, 3
      %p164 = scmp.ne.s32.totalorder %s159, %s161
      %p165 = scmp.eq.s32.totalorder %s20, 0
      %p166 = por %p164, %p165
      %p167 = scmp.ne.s32.totalorder %s159, %s161
      %p168 = scmp.eq.s32.totalorder %s25, 3
      %p169 = por %p167, %p168
      %p170 = scmp.ne.s32.totalorder %s161, %s162
      %p171 = scmp.eq.s32.totalorder %s25, 0
      %p172 = por %p170, %p171
      %p173 = scmp.ne.s32.totalorder %s161, %s162
      %p174 = scmp.eq.s32.totalorder %s26, 3
      %p175 = por %p173, %p174
      %p177 = scmp.ne.s32.totalorder %s162, %s176
      %p178 = scmp.eq.s32.totalorder %s26, 0
      %p179 = por %p177, %p178
      %s181 = sadd.s32 %s180, 1
      %p184 = scmp.eq.s32.totalorder %s20, 3
      %p185 = scmp.ne.s32.totalorder %s180, %s182
      %p186 = scmp.eq.s32.totalorder %s20, 0
      %p187 = por %p185, %p186
      %p188 = scmp.ne.s32.totalorder %s180, %s182
      %p189 = scmp.eq.s32.totalorder %s25, 3
      %p190 = por %p188, %p189
      %p191 = scmp.ne.s32.totalorder %s182, %s183
      %p192 = scmp.eq.s32.totalorder %s25, 0
      %p193 = por %p191, %p192
      %p194 = scmp.ne.s32.totalorder %s182, %s183
      %p195 = scmp.eq.s32.totalorder %s26, 3
      %p196 = por %p194, %p195
      %p198 = scmp.ne.s32.totalorder %s183, %s197
      %p199 = scmp.eq.s32.totalorder %s26, 0
      %p200 = por %p198, %p199
      %s202 = sadd.s32 %s201, 1
      %p205 = scmp.eq.s32.totalorder %s20, 3
      %p206 = scmp.ne.s32.totalorder %s201, %s203
      %p207 = scmp.eq.s32.totalorder %s20, 0
      %p208 = por %p206, %p207
      %p209 = scmp.ne.s32.totalorder %s201, %s203
      %p210 = scmp.eq.s32.totalorder %s25, 3
      %p211 = por %p209, %p210
      %p212 = scmp.ne.s32.totalorder %s203, %s204
      %p213 = scmp.eq.s32.totalorder %s25, 0
      %p214 = por %p212, %p213
      %p215 = scmp.ne.s32.totalorder %s203, %s204
      %p216 = scmp.eq.s32.totalorder %s26, 3
      %p217 = por %p215, %p216
      %p219 = scmp.ne.s32.totalorder %s204, %s218
      %p220 = scmp.eq.s32.totalorder %s26, 0
      %p221 = por %p219, %p220
      %s223 = sadd.s32 %s222, 1
      %p226 = scmp.eq.s32.totalorder %s20, 3
      %p227 = scmp.ne.s32.totalorder %s222, %s224
      %p228 = scmp.eq.s32.totalorder %s20, 0
      %p229 = por %p227, %p228
      %p230 = scmp.ne.s32.totalorder %s222, %s224
      %p231 = scmp.eq.s32.totalorder %s25, 3
      %p232 = por %p230, %p231
      %p233 = scmp.ne.s32.totalorder %s224, %s225
      %p234 = scmp.eq.s32.totalorder %s25, 0
      %p235 = por %p233, %p234
      %p236 = scmp.ne.s32.totalorder %s224, %s225
      %p237 = scmp.eq.s32.totalorder %s26, 3
      %p238 = por %p236, %p237
      %p240 = scmp.ne.s32.totalorder %s225, %s239
      %p241 = scmp.eq.s32.totalorder %s26, 0
      %p242 = por %p240, %p241
      %s244 = sadd.s32 %s243, 1
      %p247 = scmp.eq.s32.totalorder %s20, 3
      %p248 = scmp.ne.s32.totalorder %s243, %s245
      %p249 = scmp.eq.s32.totalorder %s20, 0
      %p250 = por %p248, %p249
      %p251 = scmp.ne.s32.totalorder %s243, %s245
      %p252 = scmp.eq.s32.totalorder %s25, 3
      %p253 = por %p251, %p252
      %p254 = scmp.ne.s32.totalorder %s245, %s246
      %p255 = scmp.eq.s32.totalorder %s25, 0
      %p256 = por %p254, %p255
      %p257 = scmp.ne.s32.totalorder %s245, %s246
      %p258 = scmp.eq.s32.totalorder %s26, 3
      %p259 = por %p257, %p258
      %p261 = scmp.ne.s32.totalorder %s246, %s260
      %p262 = scmp.eq.s32.totalorder %s26, 0
      %p263 = por %p261, %p262
      %s265 = sadd.s32 %s264, 1
      %p268 = scmp.eq.s32.totalorder %s20, 3
      %p269 = scmp.ne.s32.totalorder %s264, %s266
      %p270 = scmp.eq.s32.totalorder %s20, 0
      %p271 = por %p269, %p270
      %p272 = scmp.ne.s32.totalorder %s264, %s266
      %p273 = scmp.eq.s32.totalorder %s25, 3
      %p274 = por %p272, %p273
      %p275 = scmp.ne.s32.totalorder %s266, %s267
      %p276 = scmp.eq.s32.totalorder %s25, 0
      %p277 = por %p275, %p276
      %p278 = scmp.ne.s32.totalorder %s266, %s267
      %p279 = scmp.eq.s32.totalorder %s26, 3
      %p280 = por %p278, %p279
      %p282 = scmp.ne.s32.totalorder %s267, %s281
      %p283 = scmp.eq.s32.totalorder %s26, 0
      %p284 = por %p282, %p283
      %s285 = ssub.s32 %s20, %s27
      %p286 = scmp.eq.s32.totalorder %s285, 0
      %s288 = sadd.s32 %s287, 1
      %s289 = scalar_select %p286, %s287, %s288
      %p292 = pneg %p286
      %p293 = scmp.eq.s32.totalorder %s20, 3
      %p294 = por %p292, %p293
      %p295 = scmp.ne.s32.totalorder %s287, %s290
      %p296 = scmp.eq.s32.totalorder %s20, 0
      %p297 = por %p295, %p296
      %p298 = scmp.ne.s32.totalorder %s287, %s290
      %p299 = scmp.eq.s32.totalorder %s25, 3
      %p300 = por %p298, %p299
      %p301 = scmp.ne.s32.totalorder %s290, %s291
      %p302 = scmp.eq.s32.totalorder %s25, 0
      %p303 = por %p301, %p302
      %p304 = scmp.ne.s32.totalorder %s290, %s291
      %p305 = scmp.eq.s32.totalorder %s26, 3
      %p306 = por %p304, %p305
      %p308 = scmp.ne.s32.totalorder %s291, %s307
      %p309 = scmp.eq.s32.totalorder %s26, 0
      %p310 = por %p308, %p309
      %p311 = scmp.le.s32.totalorder 1, %s20
      %p312 = scmp.lt.s32.totalorder %s20, 5
      %p313 = pnand %p311, %p312
      %p314 = pneg %p313
      // Predicated region
      $region9: #{spatio_temporal_layer_gat_forward.1} parent=5 // pred_check
        _
      $region10: #{spatio_temporal_layer_gat_forward.1} parent=5 // pred_check_branch
        %316 = sbr.rel (%p313) target = $region12
      $region11: #{spatio_temporal_layer_gat_forward.1} parent=5 // pred_region
        %s317 = ssub.s32 %s20, 1
        // Predicated region
        $region13: #{spatio_temporal_layer_gat_forward.1} parent=11 // pred_check
          %p318 = pneg %p67
        $region14: #{spatio_temporal_layer_gat_forward.1} parent=11 // pred_check_branch
          %320 = sbr.rel (%p318) target = $region16
        $region15: #{spatio_temporal_layer_gat_forward.1} parent=11 // pred_region
          _
        $region16: #{spatio_temporal_layer_gat_forward.1} parent=11 // pred_fallthru
          _
        // Predicated region
        $region17: #{spatio_temporal_layer_gat_forward.1} parent=11 // pred_check
          %p321 = pneg %p88
        $region18: #{spatio_temporal_layer_gat_forward.1} parent=11 // pred_check_branch
          %323 = sbr.rel (%p321) target = $region20
        $region19: #{spatio_temporal_layer_gat_forward.1} parent=11 // pred_region
          _
        $region20: #{spatio_temporal_layer_gat_forward.1} parent=11 // pred_fallthru
          _
        // Predicated region
        $region21: #{spatio_temporal_layer_gat_forward.1} parent=11 // pred_check
          %p324 = pneg %p109
        $region22: #{spatio_temporal_layer_gat_forward.1} parent=11 // pred_check_branch
          %326 = sbr.rel (%p324) target = $region24
        $region23: #{spatio_temporal_layer_gat_forward.1} parent=11 // pred_region
          %s328 = ssub.s32 2048, 2048
          %329 = vsyncadd [#allocation3], %s328
          %s330 = sshll.u32 [#allocation2], 4
          %s331 = int_to_ptr.vmem [resolvable:$true] %s330
          %336 = dma.hbm_to_vmem [thread:$0]  %s3, 2048, %s331, [#allocation3], 128, 128, 8
        $region24: #{spatio_temporal_layer_gat_forward.1} parent=11 // pred_fallthru
          _
        // Predicated region
        $region25: #{spatio_temporal_layer_gat_forward.1} parent=11 // pred_check
          %p337 = pneg %p130
        $region26: #{spatio_temporal_layer_gat_forward.1} parent=11 // pred_check_branch
          %339 = sbr.rel (%p337) target = $region28
        $region27: #{spatio_temporal_layer_gat_forward.1} parent=11 // pred_region
          _
        $region28: #{spatio_temporal_layer_gat_forward.1} parent=11 // pred_fallthru
          _
        // Predicated region
        $region29: #{spatio_temporal_layer_gat_forward.1} parent=11 // pred_check
          %p340 = pneg %p151
        $region30: #{spatio_temporal_layer_gat_forward.1} parent=11 // pred_check_branch
          %342 = sbr.rel (%p340) target = $region32
        $region31: #{spatio_temporal_layer_gat_forward.1} parent=11 // pred_region
          _
        $region32: #{spatio_temporal_layer_gat_forward.1} parent=11 // pred_fallthru
          _
        // Predicated region
        $region33: #{spatio_temporal_layer_gat_forward.1} parent=11 // pred_check
          %p343 = pneg %p172
        $region34: #{spatio_temporal_layer_gat_forward.1} parent=11 // pred_check_branch
          %345 = sbr.rel (%p343) target = $region36
        $region35: #{spatio_temporal_layer_gat_forward.1} parent=11 // pred_region
          %s347 = ssub.s32 6144, 6144
          %348 = vsyncadd [#allocation5], %s347
          %s349 = sshll.u32 [#allocation4], 4
          %s350 = int_to_ptr.vmem [resolvable:$true] %s349
          %355 = dma.hbm_to_vmem [thread:$0]  %s6, 6144, %s350, [#allocation5], 384, 384, 24
        $region36: #{spatio_temporal_layer_gat_forward.1} parent=11 // pred_fallthru
          _
        // Predicated region
        $region37: #{spatio_temporal_layer_gat_forward.1} parent=11 // pred_check
          %p356 = pneg %p193
        $region38: #{spatio_temporal_layer_gat_forward.1} parent=11 // pred_check_branch
          %358 = sbr.rel (%p356) target = $region40
        $region39: #{spatio_temporal_layer_gat_forward.1} parent=11 // pred_region
          _
        $region40: #{spatio_temporal_layer_gat_forward.1} parent=11 // pred_fallthru
          _
        // Predicated region
        $region41: #{spatio_temporal_layer_gat_forward.1} parent=11 // pred_check
          %p359 = pneg %p214
        $region42: #{spatio_temporal_layer_gat_forward.1} parent=11 // pred_check_branch
          %361 = sbr.rel (%p359) target = $region44
        $region43: #{spatio_temporal_layer_gat_forward.1} parent=11 // pred_region
          _
        $region44: #{spatio_temporal_layer_gat_forward.1} parent=11 // pred_fallthru
          _
        // Predicated region
        $region45: #{spatio_temporal_layer_gat_forward.1} parent=11 // pred_check
          %p362 = pneg %p235
        $region46: #{spatio_temporal_layer_gat_forward.1} parent=11 // pred_check_branch
          %364 = sbr.rel (%p362) target = $region48
        $region47: #{spatio_temporal_layer_gat_forward.1} parent=11 // pred_region
          %s366 = ssub.s32 8192, 8192
          %367 = vsyncadd [#allocation5], %s366
          %s368 = sshll.u32 [#allocation6], 4
          %s369 = int_to_ptr.vmem [resolvable:$true] %s368
          %374 = dma.hbm_to_vmem [thread:$0]  %s9, 8192, %s369, [#allocation5], 256, 256, 16
        $region48: #{spatio_temporal_layer_gat_forward.1} parent=11 // pred_fallthru
          _
        // Predicated region
        $region49: #{spatio_temporal_layer_gat_forward.1} parent=11 // pred_check
          %p375 = pneg %p256
        $region50: #{spatio_temporal_layer_gat_forward.1} parent=11 // pred_check_branch
          %377 = sbr.rel (%p375) target = $region52
        $region51: #{spatio_temporal_layer_gat_forward.1} parent=11 // pred_region
          _
        $region52: #{spatio_temporal_layer_gat_forward.1} parent=11 // pred_fallthru
          _
        // Predicated region
        $region53: #{spatio_temporal_layer_gat_forward.1} parent=11 // pred_check
          %p378 = pneg %p277
        $region54: #{spatio_temporal_layer_gat_forward.1} parent=11 // pred_check_branch
          %380 = sbr.rel (%p378) target = $region56
        $region55: #{spatio_temporal_layer_gat_forward.1} parent=11 // pred_region
          _
        $region56: #{spatio_temporal_layer_gat_forward.1} parent=11 // pred_fallthru
          _
      $region12: #{spatio_temporal_layer_gat_forward.1} parent=5 // pred_fallthru
        _
      %p381 = scmp.lt.s32.totalorder %s20, 4
      // Predicated region
      $region57: #{spatio_temporal_layer_gat_forward.1} parent=5 // pred_check
        %p382 = pneg %p381
      $region58: #{spatio_temporal_layer_gat_forward.1} parent=5 // pred_check_branch
        %384 = sbr.rel (%p382) target = $region60
      $region59: #{spatio_temporal_layer_gat_forward.1} parent=5 // pred_region
        // Predicated region
        $region61: #{spatio_temporal_layer_gat_forward.1} parent=59 // pred_check
          %p385 = pneg %p40
        $region62: #{spatio_temporal_layer_gat_forward.1} parent=59 // pred_check_branch
          %387 = sbr.rel (%p385) target = $region64
        $region63: #{spatio_temporal_layer_gat_forward.1} parent=59 // pred_region
          %p388 = scmp.lt.s32.totalorder %s20, 3
          %s389 = scalar_select %p388, %s20, 3
          %s390 = smul.addr %s389, 2
          %s391 = smul.addr %s390, 8
          %s392 = scalar_lea.vmem %s0, %s391
        $region64: #{spatio_temporal_layer_gat_forward.1} parent=59 // pred_fallthru
          _
      $region60: #{spatio_temporal_layer_gat_forward.1} parent=5 // pred_fallthru
        _
      %p393 = scmp.le.s32.totalorder 1, %s20
      %p394 = scmp.lt.s32.totalorder %s20, 5
      %p395 = pnand %p393, %p394
      %p396 = pneg %p395
      // Predicated region
      $region65: #{spatio_temporal_layer_gat_forward.1} parent=5 // pred_check
        _
      $region66: #{spatio_temporal_layer_gat_forward.1} parent=5 // pred_check_branch
        %398 = sbr.rel (%p395) target = $region68
      $region67: #{spatio_temporal_layer_gat_forward.1} parent=5 // pred_region
        %s399 = ssub.s32 %s20, 1
        // Predicated region
        $region69: #{spatio_temporal_layer_gat_forward.1} parent=67 // pred_check
          %p400 = pneg %p109
        $region70: #{spatio_temporal_layer_gat_forward.1} parent=67 // pred_check_branch
          %402 = sbr.rel (%p400) target = $region72
        $region71: #{spatio_temporal_layer_gat_forward.1} parent=67 // pred_region
          %403 = dma.done [#allocation3], 2048
        $region72: #{spatio_temporal_layer_gat_forward.1} parent=67 // pred_fallthru
          _
        // Predicated region
        $region73: #{spatio_temporal_layer_gat_forward.1} parent=67 // pred_check
          %p404 = pneg %p172
        $region74: #{spatio_temporal_layer_gat_forward.1} parent=67 // pred_check_branch
          %406 = sbr.rel (%p404) target = $region76
        $region75: #{spatio_temporal_layer_gat_forward.1} parent=67 // pred_region
          %407 = dma.done [#allocation5], 6144
        $region76: #{spatio_temporal_layer_gat_forward.1} parent=67 // pred_fallthru
          _
        // Predicated region
        $region77: #{spatio_temporal_layer_gat_forward.1} parent=67 // pred_check
          %p408 = pneg %p235
        $region78: #{spatio_temporal_layer_gat_forward.1} parent=67 // pred_check_branch
          %410 = sbr.rel (%p408) target = $region80
        $region79: #{spatio_temporal_layer_gat_forward.1} parent=67 // pred_region
          %411 = dma.done [#allocation5], 8192
        $region80: #{spatio_temporal_layer_gat_forward.1} parent=67 // pred_fallthru
          _
        %p412 = scmp.lt.s32.totalorder %s25, 3
        %s413 = scalar_select %p412, %s25, 3
        %s414 = smul.addr %s413, 2
        %s415 = smul.addr %s414, 8
        %s416 = scalar_lea.vmem %s0, %s415
        %p417 = pneg %p46
        %p418 = pneg %p43
        %p419 = pneg %p67
        %p420 = pneg %p64
        %p421 = pneg %p88
        %p422 = pneg %p85
        %p423 = pneg %p109
        %p424 = pneg %p106
        %p425 = pneg %p130
        %p426 = pneg %p127
        %p427 = pneg %p151
        %p428 = pneg %p148
        %p429 = pneg %p172
        %p430 = pneg %p169
        %p431 = pneg %p193
        %p432 = pneg %p190
        %p433 = pneg %p214
        %p434 = pneg %p211
        %p435 = pneg %p235
        %p436 = pneg %p232
        %p437 = pneg %p256
        %p438 = pneg %p253
        %p439 = pneg %p277
        %p440 = pneg %p274
        %p441 = pneg %p303
        %p442 = pneg %p300
        %p443 = scmp.lt.s32.totalorder %s25, 3
        %s444 = scalar_select %p443, %s25, 3
        %s445 = smul.addr %s444, 4
        %s446 = smul.addr %s445, 8
        %s447 = scalar_lea.vmem %s12, %s446
        %p448 = scmp.lt.s32.totalorder %s25, 3
        %s449 = scalar_select %p448, %s25, 3
        %s450 = smul.addr %s449, 2
        %s451 = smul.addr %s450, 8
        %s452 = scalar_lea.vmem %s0, %s451
        %p453 = scmp.lt.s32.totalorder %s25, 3
        %s454 = scalar_select %p453, %s25, 3
        %s455 = smul.addr %s454, 4
        %s456 = smul.addr %s455, 8
        %s457 = scalar_lea.vmem %s12, %s456
        %v458 = vld [vmem:[%s452] sm:$0xff]
        %v459 = vld [vmem:[%s452 + $0x8] sm:$0xff]
        %v460 = vld [vmem:[%s1] sm:$0xff]
        %v461 = vld [vmem:[%s1 + $0x8] sm:$0xff]
        %v462 = vld [vmem:[%s1 + $0x10] sm:$0xff]
        %v463 = vld [vmem:[%s1 + $0x18] sm:$0xff]
        %v464 = vld [vmem:[%s1 + $0x20] sm:$0xff]
        %v465 = vld [vmem:[%s1 + $0x28] sm:$0xff]
        %v466 = vld [vmem:[%s1 + $0x30] sm:$0xff]
        %v467 = vld [vmem:[%s1 + $0x38] sm:$0xff]
        %v468 = vld [vmem:[%s1 + $0x40] sm:$0xff]
        %v469 = vld [vmem:[%s1 + $0x48] sm:$0xff]
        %v470 = vld [vmem:[%s1 + $0x50] sm:$0xff]
        %v471 = vld [vmem:[%s1 + $0x58] sm:$0xff]
        %v472 = vld [vmem:[%s1 + $0x60] sm:$0xff]
        %v473 = vld [vmem:[%s1 + $0x68] sm:$0xff]
        %v474 = vld [vmem:[%s1 + $0x70] sm:$0xff]
        %v475 = vld [vmem:[%s1 + $0x78] sm:$0xff]
        %v476 = vld [vmem:[%s1 + $0x80] sm:$0xff]
        %v477 = vld [vmem:[%s1 + $0x88] sm:$0xff]
        %v478 = vld [vmem:[%s1 + $0x90] sm:$0xff]
        %v479 = vld [vmem:[%s1 + $0x98] sm:$0xff]
        %v480 = vld [vmem:[%s1 + $0xa0] sm:$0xff]
        %v481 = vld [vmem:[%s1 + $0xa8] sm:$0xff]
        %v482 = vld [vmem:[%s1 + $0xb0] sm:$0xff]
        %v483 = vld [vmem:[%s1 + $0xb8] sm:$0xff]
        %v484 = vld [vmem:[%s1 + $0xc0] sm:$0xff]
        %v485 = vld [vmem:[%s1 + $0xc8] sm:$0xff]
        %v486 = vld [vmem:[%s1 + $0xd0] sm:$0xff]
        %v487 = vld [vmem:[%s1 + $0xd8] sm:$0xff]
        %v488 = vld [vmem:[%s1 + $0xe0] sm:$0xff]
        %v489 = vld [vmem:[%s1 + $0xe8] sm:$0xff]
        %v490 = vld [vmem:[%s1 + $0xf0] sm:$0xff]
        %v491 = vld [vmem:[%s1 + $0xf8] sm:$0xff]
        %v492 = vld [vmem:[%s2] sm:$0xf]
        %v494 = vlaneseq
        %v495 = vshrl.u32 %v494, 7
        %v496 = vsub.s32 0, %v495
        %v497 = vrot.slane %v492, %v496
        %v498 = vlaneseq
        %v499 = vshrl.u32 %v498, 7
        %v500 = vsub.s32 1, %v499
        %v501 = vrot.slane %v492, %v500
        %v502 = vlaneseq
        %v503 = vshrl.u32 %v502, 7
        %v504 = vsub.s32 2, %v503
        %v505 = vrot.slane %v492, %v504
        %v506 = vlaneseq
        %v507 = vshrl.u32 %v506, 7
        %v508 = vsub.s32 3, %v507
        %v509 = vrot.slane %v492, %v508
        %vm514 = vcmask 523264
        %v516 = vsel %vm514, %v458, 0
        %v519 = vsel %vm514, %v459, 0
        %521 = vmatprep.subr.mxu0 %v461
        %522 = vmatpush1.msra.mxu0 %v460
        %523 = vmatprep.subr.mxu0 %v465
        %524 = vmatpush1.msra.mxu0 %v464
        %525 = vmatprep.subr.mxu0 %v469
        %526 = vmatpush1.msra.mxu0 %v468
        %527 = vmatprep.subr.mxu0 %v473
        %528 = vmatpush1.msra.mxu0 %v472
        %529 = vmatprep.subr.mxu0 %v477
        %530 = vmatpush1.msra.mxu0 %v476
        %531 = vmatprep.subr.mxu0 %v481
        %532 = vmatpush1.msra.mxu0 %v480
        %533 = vmatprep.subr.mxu0 %v485
        %534 = vmatpush1.msra.mxu0 %v484
        %535 = vmatprep.subr.mxu0 %v489
        %536 = vmatpush1.msra.mxu0 %v488
        %537 = vmatprep.subr.mxu0 0.0
        %538 = vmatpush1.msra.mxu0 0.0
        %539 = vmatprep.subr.mxu0 0.0
        %540 = vmatpush1.msra.mxu0 0.0
        %541 = vmatprep.subr.mxu0 0.0
        %542 = vmatpush1.msra.mxu0 0.0
        %543 = vmatprep.subr.mxu0 0.0
        %544 = vmatpush1.msra.mxu0 0.0
        %545 = vmatprep.subr.mxu0 0.0
        %546 = vmatpush1.msra.mxu0 0.0
        %547 = vmatprep.subr.mxu0 0.0
        %548 = vmatpush1.msra.mxu0 0.0
        %549 = vmatprep.subr.mxu0 0.0
        %550 = vmatpush1.msra.mxu0 0.0
        %551 = vmatprep.subr.mxu0 0.0
        %552 = vmatpush1.msra.mxu0 0.0
        %553 = vmatprep.subr.mxu0 0.0
        %554 = vmatpush1.msra.mxu0 0.0
        %555 = vmatprep.subr.mxu0 0.0
        %556 = vmatpush1.msra.mxu0 0.0
        %557 = vmatprep.subr.mxu0 0.0
        %558 = vmatpush1.msra.mxu0 0.0
        %559 = vmatprep.subr.mxu0 0.0
        %560 = vmatpush1.msra.mxu0 0.0
        %561 = vmatprep.subr.mxu0 0.0
        %562 = vmatpush1.msra.mxu0 0.0
        %563 = vmatprep.subr.mxu0 0.0
        %564 = vmatpush1.msra.mxu0 0.0
        %565 = vmatprep.subr.mxu0 0.0
        %566 = vmatpush1.msra.mxu0 0.0
        %567 = vmatprep.subr.mxu0 0.0
        %568 = vmatpush1.msra.mxu0 0.0
        %569 = vmatprep.subr.mxu0 0.0
        %570 = vmatpush1.msra.mxu0 0.0
        %571 = vmatprep.subr.mxu0 0.0
        %572 = vmatpush1.msra.mxu0 0.0
        %573 = vmatprep.subr.mxu0 0.0
        %574 = vmatpush1.msra.mxu0 0.0
        %575 = vmatprep.subr.mxu0 0.0
        %576 = vmatpush1.msra.mxu0 0.0
        %577 = vmatprep.subr.mxu0 0.0
        %578 = vmatpush1.msra.mxu0 0.0
        %579 = vmatprep.subr.mxu0 0.0
        %580 = vmatpush1.msra.mxu0 0.0
        %581 = vmatprep.subr.mxu0 0.0
        %582 = vmatpush1.msra.mxu0 0.0
        %583 = vmatprep.subr.mxu0 0.0
        %584 = vmatpush1.msra.mxu0 0.0
        %585 = vmatprep.mubr.f32.mxu0 0.0
        %586 = vmatmul.mubr.f32.gmra.mrb[0].mxu0 %v516
        %v587 = vpop.f32.mrb[0].mxu0
        %v588 = vadd.f32 %v497, %v587
        %v589 = vpop.f32.mrb[0].mxu0
        %v590 = vadd.f32 %v501, %v589
        %591 = vmatprep.mubr.f32.mxu0 0.0
        %592 = vmatmul.mubr.f32.gmra.mrb[0].mxu0 %v519
        %v593 = vpop.f32.mrb[0].mxu0
        %v594 = vadd.f32 %v497, %v593
        %v595 = vpop.f32.mrb[0].mxu0
        %v596 = vadd.f32 %v501, %v595
        %597 = vdwg.mxu0
        %598 = vmatprep.subr.mxu0 %v463
        %599 = vmatpush1.msra.mxu0 %v462
        %600 = vmatprep.subr.mxu0 %v467
        %601 = vmatpush1.msra.mxu0 %v466
        %602 = vmatprep.subr.mxu0 %v471
        %603 = vmatpush1.msra.mxu0 %v470
        %604 = vmatprep.subr.mxu0 %v475
        %605 = vmatpush1.msra.mxu0 %v474
        %606 = vmatprep.subr.mxu0 %v479
        %607 = vmatpush1.msra.mxu0 %v478
        %608 = vmatprep.subr.mxu0 %v483
        %609 = vmatpush1.msra.mxu0 %v482
        %610 = vmatprep.subr.mxu0 %v487
        %611 = vmatpush1.msra.mxu0 %v486
        %612 = vmatprep.subr.mxu0 %v491
        %613 = vmatpush1.msra.mxu0 %v490
        %614 = vmatprep.subr.mxu0 0.0
        %615 = vmatpush1.msra.mxu0 0.0
        %616 = vmatprep.subr.mxu0 0.0
        %617 = vmatpush1.msra.mxu0 0.0
        %618 = vmatprep.subr.mxu0 0.0
        %619 = vmatpush1.msra.mxu0 0.0
        %620 = vmatprep.subr.mxu0 0.0
        %621 = vmatpush1.msra.mxu0 0.0
        %622 = vmatprep.subr.mxu0 0.0
        %623 = vmatpush1.msra.mxu0 0.0
        %624 = vmatprep.subr.mxu0 0.0
        %625 = vmatpush1.msra.mxu0 0.0
        %626 = vmatprep.subr.mxu0 0.0
        %627 = vmatpush1.msra.mxu0 0.0
        %628 = vmatprep.subr.mxu0 0.0
        %629 = vmatpush1.msra.mxu0 0.0
        %630 = vmatprep.subr.mxu0 0.0
        %631 = vmatpush1.msra.mxu0 0.0
        %632 = vmatprep.subr.mxu0 0.0
        %633 = vmatpush1.msra.mxu0 0.0
        %634 = vmatprep.subr.mxu0 0.0
        %635 = vmatpush1.msra.mxu0 0.0
        %636 = vmatprep.subr.mxu0 0.0
        %637 = vmatpush1.msra.mxu0 0.0
        %638 = vmatprep.subr.mxu0 0.0
        %639 = vmatpush1.msra.mxu0 0.0
        %640 = vmatprep.subr.mxu0 0.0
        %641 = vmatpush1.msra.mxu0 0.0
        %642 = vmatprep.subr.mxu0 0.0
        %643 = vmatpush1.msra.mxu0 0.0
        %644 = vmatprep.subr.mxu0 0.0
        %645 = vmatpush1.msra.mxu0 0.0
        %646 = vmatprep.subr.mxu0 0.0
        %647 = vmatpush1.msra.mxu0 0.0
        %648 = vmatprep.subr.mxu0 0.0
        %649 = vmatpush1.msra.mxu0 0.0
        %650 = vmatprep.subr.mxu0 0.0
        %651 = vmatpush1.msra.mxu0 0.0
        %652 = vmatprep.subr.mxu0 0.0
        %653 = vmatpush1.msra.mxu0 0.0
        %654 = vmatprep.subr.mxu0 0.0
        %655 = vmatpush1.msra.mxu0 0.0
        %656 = vmatprep.subr.mxu0 0.0
        %657 = vmatpush1.msra.mxu0 0.0
        %658 = vmatprep.subr.mxu0 0.0
        %659 = vmatpush1.msra.mxu0 0.0
        %660 = vmatprep.subr.mxu0 0.0
        %661 = vmatpush1.msra.mxu0 0.0
        %662 = vmatprep.mubr.f32.mxu0 0.0
        %663 = vmatmul.mubr.f32.gmra.mrb[0].mxu0 %v516
        %v664 = vpop.f32.mrb[0].mxu0
        %v665 = vadd.f32 %v505, %v664
        %v666 = vpop.f32.mrb[0].mxu0
        %v667 = vadd.f32 %v509, %v666
        %668 = vmatprep.mubr.f32.mxu0 0.0
        %669 = vmatmul.mubr.f32.gmra.mrb[0].mxu0 %v519
        %v670 = vpop.f32.mrb[0].mxu0
        %v671 = vadd.f32 %v505, %v670
        %v672 = vpop.f32.mrb[0].mxu0
        %v673 = vadd.f32 %v509, %v672
        %674 = vdwg.mxu0
        %v675 = vtanh.pop %v588
        %v676 = vtanh.pop %v594
        %v677 = vxor.u32 %v590, 2147483648
        %v678 = vxor.u32 %v596, 2147483648
        %v679 = vmul.f32 %v677, 1.442695
        %v680 = vpow.pop %v679
        %v681 = vmul.f32 %v678, 1.442695
        %v682 = vpow.pop %v681
        %v683 = vadd.f32 %v680, 1.0
        %v684 = vadd.f32 %v682, 1.0
        %v685 = vrcp.pop %v683
        %v686 = vmul.f32 1.0, %v685
        %v687 = vrcp.pop %v684
        %v688 = vmul.f32 1.0, %v687
        %v689 = vmul.f32 %v675, %v686
        %v690 = vmul.f32 %v676, %v688
        %v691 = vld [vmem:[#allocation2] sm:$0xff]
        %v692 = vld [vmem:[#allocation2 + $0x8] sm:$0xff]
        %v693 = vld [vmem:[#allocation2 + $0x10] sm:$0xff]
        %v694 = vld [vmem:[#allocation2 + $0x18] sm:$0xff]
        %v695 = vld [vmem:[#allocation2 + $0x20] sm:$0xff]
        %v696 = vld [vmem:[#allocation2 + $0x28] sm:$0xff]
        %v697 = vld [vmem:[#allocation2 + $0x30] sm:$0xff]
        %v698 = vld [vmem:[#allocation2 + $0x38] sm:$0xff]
        %v699 = vld [vmem:[#allocation2 + $0x40] sm:$0xff]
        %v700 = vld [vmem:[#allocation2 + $0x48] sm:$0xff]
        %v701 = vld [vmem:[#allocation2 + $0x50] sm:$0xff]
        %v702 = vld [vmem:[#allocation2 + $0x58] sm:$0xff]
        %v703 = vld [vmem:[#allocation2 + $0x60] sm:$0xff]
        %v704 = vld [vmem:[#allocation2 + $0x68] sm:$0xff]
        %v705 = vld [vmem:[#allocation2 + $0x70] sm:$0xff]
        %v706 = vld [vmem:[#allocation2 + $0x78] sm:$0xff]
        %v707 = vld [vmem:[%s4] sm:$0x1]
        %v708 = vld [vmem:[%s5] sm:$0x1]
        %v709 = vadd.f32 %v689, %v690
        %v710 = vrot.slane %v709, 4
        %v711 = vadd.f32 %v709, %v710
        %v712 = vrot.slane %v711, 2
        %v713 = vadd.f32 %v711, %v712
        %v714 = vrot.slane %v713, 1
        %v715 = vadd.f32 %v713, %v714
        %v716 = vrcp.pop 16.0
        %v717 = vmul.f32 %v715, %v716
        %v718 = vmul.f32 %v689, %v689
        %v719 = vmul.f32 %v690, %v690
        %v720 = vadd.f32 %v718, %v719
        %v721 = vrot.slane %v720, 4
        %v722 = vadd.f32 %v720, %v721
        %v723 = vrot.slane %v722, 2
        %v724 = vadd.f32 %v722, %v723
        %v725 = vrot.slane %v724, 1
        %v726 = vadd.f32 %v724, %v725
        %v727 = vmul.f32 %v726, %v716
        %vm728 = vcmask 1040384
        %v729 = vsel %vm728, %v717, %v727
        %730 = vmatprep.subr.mxu0 0.0
        %731 = vmatpush1.msra.mxu0 %v691
        %732 = vmatprep.subr.mxu0 0.0
        %733 = vmatpush1.msra.mxu0 %v692
        %734 = vmatprep.subr.mxu0 0.0
        %735 = vmatpush1.msra.mxu0 %v693
        %736 = vmatprep.subr.mxu0 0.0
        %737 = vmatpush1.msra.mxu0 %v694
        %738 = vmatprep.subr.mxu0 0.0
        %739 = vmatpush1.msra.mxu0 %v695
        %740 = vmatprep.subr.mxu0 0.0
        %741 = vmatpush1.msra.mxu0 %v696
        %742 = vmatprep.subr.mxu0 0.0
        %743 = vmatpush1.msra.mxu0 %v697
        %744 = vmatprep.subr.mxu0 0.0
        %745 = vmatpush1.msra.mxu0 %v698
        %746 = vmatprep.subr.mxu0 0.0
        %747 = vmatpush1.msra.mxu0 %v699
        %748 = vmatprep.subr.mxu0 0.0
        %749 = vmatpush1.msra.mxu0 %v700
        %750 = vmatprep.subr.mxu0 0.0
        %751 = vmatpush1.msra.mxu0 %v701
        %752 = vmatprep.subr.mxu0 0.0
        %753 = vmatpush1.msra.mxu0 %v702
        %754 = vmatprep.subr.mxu0 0.0
        %755 = vmatpush1.msra.mxu0 %v703
        %756 = vmatprep.subr.mxu0 0.0
        %757 = vmatpush1.msra.mxu0 %v704
        %758 = vmatprep.subr.mxu0 0.0
        %759 = vmatpush1.msra.mxu0 %v705
        %760 = vmatprep.subr.mxu0 0.0
        %761 = vmatpush1.msra.mxu0 %v706
        %762 = vmatprep.subr.mxu0 0.0
        %763 = vmatpush1.msra.mxu0 0.0
        %764 = vmatprep.subr.mxu0 0.0
        %765 = vmatpush1.msra.mxu0 0.0
        %766 = vmatprep.subr.mxu0 0.0
        %767 = vmatpush1.msra.mxu0 0.0
        %768 = vmatprep.subr.mxu0 0.0
        %769 = vmatpush1.msra.mxu0 0.0
        %770 = vmatprep.subr.mxu0 0.0
        %771 = vmatpush1.msra.mxu0 0.0
        %772 = vmatprep.subr.mxu0 0.0
        %773 = vmatpush1.msra.mxu0 0.0
        %774 = vmatprep.subr.mxu0 0.0
        %775 = vmatpush1.msra.mxu0 0.0
        %776 = vmatprep.subr.mxu0 0.0
        %777 = vmatpush1.msra.mxu0 0.0
        %778 = vmatprep.subr.mxu0 0.0
        %779 = vmatpush1.msra.mxu0 0.0
        %780 = vmatprep.subr.mxu0 0.0
        %781 = vmatpush1.msra.mxu0 0.0
        %782 = vmatprep.subr.mxu0 0.0
        %783 = vmatpush1.msra.mxu0 0.0
        %784 = vmatprep.subr.mxu0 0.0
        %785 = vmatpush1.msra.mxu0 0.0
        %786 = vmatprep.subr.mxu0 0.0
        %787 = vmatpush1.msra.mxu0 0.0
        %788 = vmatprep.subr.mxu0 0.0
        %789 = vmatpush1.msra.mxu0 0.0
        %790 = vmatprep.subr.mxu0 0.0
        %791 = vmatpush1.msra.mxu0 0.0
        %792 = vmatprep.subr.mxu0 0.0
        %793 = vmatpush1.msra.mxu0 0.0
        %794 = vmatprep.mubr.f32.mxu0 0.0
        %795 = vmatmul.mubr.f32.gmra.mrb[0].mxu0 %v729
        %v796 = vpop.f32.mrb[0].mxu0
        %v797 = vadd.f32 0.0, %v796
        %v798 = vpop.f32.mrb[0].mxu0
        %799 = vdwg.mxu0
        %v800 = vmul.f32 %v797, %v797
        %v802 = vrot.slane %v800, 7
        %v804 = vsub.f32 %v797, %v802
        %v805 = vmax.f32 %v804, 0.0
        %v806 = vlaneseq
        %v807 = vshrl.u32 %v806, 7
        %v808 = vsub.s32 0, %v807
        %v809 = vrot.slane %v797, %v808
        %v810 = vsub.f32 %v689, %v809
        %v811 = vsub.f32 %v690, %v809
        %v812 = vadd.f32 %v805, 1e-05
        %v813 = vrsqrt.pop %v812
        %v814 = vlaneseq
        %v815 = vshrl.u32 %v814, 7
        %v816 = vsub.s32 1, %v815
        %v817 = vrot.slane %v813, %v816
        %v818 = vmul.f32 %v810, %v817
        %v819 = vmul.f32 %v811, %v817
        %v821 = vlaneseq
        %v822 = vshrl.u32 %v821, 7
        %v823 = vsub.s32 0, %v822
        %v824 = vrot.slane %v707, %v823
        %v826 = vmul.f32 %v818, %v824
        %v827 = vmul.f32 %v819, %v824
        %v829 = vlaneseq
        %v830 = vshrl.u32 %v829, 7
        %v831 = vsub.s32 0, %v830
        %v832 = vrot.slane %v708, %v831
        %v834 = vadd.f32 %v826, %v832
        %v835 = vadd.f32 %v827, %v832
        %v836 = vld [vmem:[#allocation4] sm:$0xff]
        %v837 = vld [vmem:[#allocation4 + $0x8] sm:$0xff]
        %v838 = vld [vmem:[#allocation4 + $0x10] sm:$0xff]
        %v839 = vld [vmem:[#allocation4 + $0x18] sm:$0xff]
        %v840 = vld [vmem:[#allocation4 + $0x20] sm:$0xff]
        %v841 = vld [vmem:[#allocation4 + $0x28] sm:$0xff]
        %v842 = vld [vmem:[#allocation4 + $0x30] sm:$0xff]
        %v843 = vld [vmem:[#allocation4 + $0x38] sm:$0xff]
        %v844 = vld [vmem:[#allocation4 + $0x40] sm:$0xff]
        %v845 = vld [vmem:[#allocation4 + $0x48] sm:$0xff]
        %v846 = vld [vmem:[#allocation4 + $0x50] sm:$0xff]
        %v847 = vld [vmem:[#allocation4 + $0x58] sm:$0xff]
        %v848 = vld [vmem:[#allocation4 + $0x60] sm:$0xff]
        %v849 = vld [vmem:[#allocation4 + $0x68] sm:$0xff]
        %v850 = vld [vmem:[#allocation4 + $0x70] sm:$0xff]
        %v851 = vld [vmem:[#allocation4 + $0x78] sm:$0xff]
        %v852 = vld [vmem:[#allocation4 + $0x80] sm:$0xff]
        %v853 = vld [vmem:[#allocation4 + $0x88] sm:$0xff]
        %v854 = vld [vmem:[#allocation4 + $0x90] sm:$0xff]
        %v855 = vld [vmem:[#allocation4 + $0x98] sm:$0xff]
        %v856 = vld [vmem:[#allocation4 + $0xa0] sm:$0xff]
        %v857 = vld [vmem:[#allocation4 + $0xa8] sm:$0xff]
        %v858 = vld [vmem:[#allocation4 + $0xb0] sm:$0xff]
        %v859 = vld [vmem:[#allocation4 + $0xb8] sm:$0xff]
        %v860 = vld [vmem:[#allocation4 + $0xc0] sm:$0xff]
        %v861 = vld [vmem:[#allocation4 + $0xc8] sm:$0xff]
        %v862 = vld [vmem:[#allocation4 + $0xd0] sm:$0xff]
        %v863 = vld [vmem:[#allocation4 + $0xd8] sm:$0xff]
        %v864 = vld [vmem:[#allocation4 + $0xe0] sm:$0xff]
        %v865 = vld [vmem:[#allocation4 + $0xe8] sm:$0xff]
        %v866 = vld [vmem:[#allocation4 + $0xf0] sm:$0xff]
        %v867 = vld [vmem:[#allocation4 + $0xf8] sm:$0xff]
        %v868 = vld [vmem:[#allocation4 + $0x100] sm:$0xff]
        %v869 = vld [vmem:[#allocation4 + $0x108] sm:$0xff]
        %v870 = vld [vmem:[#allocation4 + $0x110] sm:$0xff]
        %v871 = vld [vmem:[#allocation4 + $0x118] sm:$0xff]
        %v872 = vld [vmem:[#allocation4 + $0x120] sm:$0xff]
        %v873 = vld [vmem:[#allocation4 + $0x128] sm:$0xff]
        %v874 = vld [vmem:[#allocation4 + $0x130] sm:$0xff]
        %v875 = vld [vmem:[#allocation4 + $0x138] sm:$0xff]
        %v876 = vld [vmem:[#allocation4 + $0x140] sm:$0xff]
        %v877 = vld [vmem:[#allocation4 + $0x148] sm:$0xff]
        %v878 = vld [vmem:[#allocation4 + $0x150] sm:$0xff]
        %v879 = vld [vmem:[#allocation4 + $0x158] sm:$0xff]
        %v880 = vld [vmem:[#allocation4 + $0x160] sm:$0xff]
        %v881 = vld [vmem:[#allocation4 + $0x168] sm:$0xff]
        %v882 = vld [vmem:[#allocation4 + $0x170] sm:$0xff]
        %v883 = vld [vmem:[#allocation4 + $0x178] sm:$0xff]
        %884 = vmatprep.subr.mxu0 %v837
        %885 = vmatpush1.msra.mxu0 %v836
        %886 = vmatprep.subr.mxu0 %v840
        %887 = vmatpush1.msra.mxu0 %v839
        %888 = vmatprep.subr.mxu0 %v843
        %889 = vmatpush1.msra.mxu0 %v842
        %890 = vmatprep.subr.mxu0 %v846
        %891 = vmatpush1.msra.mxu0 %v845
        %892 = vmatprep.subr.mxu0 %v849
        %893 = vmatpush1.msra.mxu0 %v848
        %894 = vmatprep.subr.mxu0 %v852
        %895 = vmatpush1.msra.mxu0 %v851
        %896 = vmatprep.subr.mxu0 %v855
        %897 = vmatpush1.msra.mxu0 %v854
        %898 = vmatprep.subr.mxu0 %v858
        %899 = vmatpush1.msra.mxu0 %v857
        %900 = vmatprep.subr.mxu0 %v861
        %901 = vmatpush1.msra.mxu0 %v860
        %902 = vmatprep.subr.mxu0 %v864
        %903 = vmatpush1.msra.mxu0 %v863
        %904 = vmatprep.subr.mxu0 %v867
        %905 = vmatpush1.msra.mxu0 %v866
        %906 = vmatprep.subr.mxu0 %v870
        %907 = vmatpush1.msra.mxu0 %v869
        %908 = vmatprep.subr.mxu0 %v873
        %909 = vmatpush1.msra.mxu0 %v872
        %910 = vmatprep.subr.mxu0 %v876
        %911 = vmatpush1.msra.mxu0 %v875
        %912 = vmatprep.subr.mxu0 %v879
        %913 = vmatpush1.msra.mxu0 %v878
        %914 = vmatprep.subr.mxu0 %v882
        %915 = vmatpush1.msra.mxu0 %v881
        %916 = vmatprep.subr.mxu0 0.0
        %917 = vmatpush1.msra.mxu0 0.0
        %918 = vmatprep.subr.mxu0 0.0
        %919 = vmatpush1.msra.mxu0 0.0
        %920 = vmatprep.subr.mxu0 0.0
        %921 = vmatpush1.msra.mxu0 0.0
        %922 = vmatprep.subr.mxu0 0.0
        %923 = vmatpush1.msra.mxu0 0.0
        %924 = vmatprep.subr.mxu0 0.0
        %925 = vmatpush1.msra.mxu0 0.0
        %926 = vmatprep.subr.mxu0 0.0
        %927 = vmatpush1.msra.mxu0 0.0
        %928 = vmatprep.subr.mxu0 0.0
        %929 = vmatpush1.msra.mxu0 0.0
        %930 = vmatprep.subr.mxu0 0.0
        %931 = vmatpush1.msra.mxu0 0.0
        %932 = vmatprep.subr.mxu0 0.0
        %933 = vmatpush1.msra.mxu0 0.0
        %934 = vmatprep.subr.mxu0 0.0
        %935 = vmatpush1.msra.mxu0 0.0
        %936 = vmatprep.subr.mxu0 0.0
        %937 = vmatpush1.msra.mxu0 0.0
        %938 = vmatprep.subr.mxu0 0.0
        %939 = vmatpush1.msra.mxu0 0.0
        %940 = vmatprep.subr.mxu0 0.0
        %941 = vmatpush1.msra.mxu0 0.0
        %942 = vmatprep.subr.mxu0 0.0
        %943 = vmatpush1.msra.mxu0 0.0
        %944 = vmatprep.subr.mxu0 0.0
        %945 = vmatpush1.msra.mxu0 0.0
        %946 = vmatprep.subr.mxu0 0.0
        %947 = vmatpush1.msra.mxu0 0.0
        %948 = vmatprep.mubr.f32.mxu0 0.0
        %949 = vmatmul.mubr.f32.gmra.mrb[0].mxu0 %v834
        %v950 = vpop.f32.mrb[0].mxu0
        %v951 = vadd.f32 0.0, %v950
        %v952 = vpop.f32.mrb[0].mxu0
        %v953 = vadd.f32 0.0, %v952
        %954 = vmatprep.mubr.f32.mxu0 0.0
        %955 = vmatmul.mubr.f32.gmra.mrb[0].mxu0 %v835
        %v956 = vpop.f32.mrb[0].mxu0
        %v957 = vadd.f32 0.0, %v956
        %v958 = vpop.f32.mrb[0].mxu0
        %v959 = vadd.f32 0.0, %v958
        %960 = vdwg.mxu0
        %961 = vmatprep.subr.mxu0 0.0
        %962 = vmatpush1.msra.mxu0 %v838
        %963 = vmatprep.subr.mxu0 0.0
        %964 = vmatpush1.msra.mxu0 %v841
        %965 = vmatprep.subr.mxu0 0.0
        %966 = vmatpush1.msra.mxu0 %v844
        %967 = vmatprep.subr.mxu0 0.0
        %968 = vmatpush1.msra.mxu0 %v847
        %969 = vmatprep.subr.mxu0 0.0
        %970 = vmatpush1.msra.mxu0 %v850
        %971 = vmatprep.subr.mxu0 0.0
        %972 = vmatpush1.msra.mxu0 %v853
        %973 = vmatprep.subr.mxu0 0.0
        %974 = vmatpush1.msra.mxu0 %v856
        %975 = vmatprep.subr.mxu0 0.0
        %976 = vmatpush1.msra.mxu0 %v859
        %977 = vmatprep.subr.mxu0 0.0
        %978 = vmatpush1.msra.mxu0 %v862
        %979 = vmatprep.subr.mxu0 0.0
        %980 = vmatpush1.msra.mxu0 %v865
        %981 = vmatprep.subr.mxu0 0.0
        %982 = vmatpush1.msra.mxu0 %v868
        %983 = vmatprep.subr.mxu0 0.0
        %984 = vmatpush1.msra.mxu0 %v871
        %985 = vmatprep.subr.mxu0 0.0
        %986 = vmatpush1.msra.mxu0 %v874
        %987 = vmatprep.subr.mxu0 0.0
        %988 = vmatpush1.msra.mxu0 %v877
        %989 = vmatprep.subr.mxu0 0.0
        %990 = vmatpush1.msra.mxu0 %v880
        %991 = vmatprep.subr.mxu0 0.0
        %992 = vmatpush1.msra.mxu0 %v883
        %993 = vmatprep.subr.mxu0 0.0
        %994 = vmatpush1.msra.mxu0 0.0
        %995 = vmatprep.subr.mxu0 0.0
        %996 = vmatpush1.msra.mxu0 0.0
        %997 = vmatprep.subr.mxu0 0.0
        %998 = vmatpush1.msra.mxu0 0.0
        %999 = vmatprep.subr.mxu0 0.0
        %1000 = vmatpush1.msra.mxu0 0.0
        %1001 = vmatprep.subr.mxu0 0.0
        %1002 = vmatpush1.msra.mxu0 0.0
        %1003 = vmatprep.subr.mxu0 0.0
        %1004 = vmatpush1.msra.mxu0 0.0
        %1005 = vmatprep.subr.mxu0 0.0
        %1006 = vmatpush1.msra.mxu0 0.0
        %1007 = vmatprep.subr.mxu0 0.0
        %1008 = vmatpush1.msra.mxu0 0.0
        %1009 = vmatprep.subr.mxu0 0.0
        %1010 = vmatpush1.msra.mxu0 0.0
        %1011 = vmatprep.subr.mxu0 0.0
        %1012 = vmatpush1.msra.mxu0 0.0
        %1013 = vmatprep.subr.mxu0 0.0
        %1014 = vmatpush1.msra.mxu0 0.0
        %1015 = vmatprep.subr.mxu0 0.0
        %1016 = vmatpush1.msra.mxu0 0.0
        %1017 = vmatprep.subr.mxu0 0.0
        %1018 = vmatpush1.msra.mxu0 0.0
        %1019 = vmatprep.subr.mxu0 0.0
        %1020 = vmatpush1.msra.mxu0 0.0
        %1021 = vmatprep.subr.mxu0 0.0
        %1022 = vmatpush1.msra.mxu0 0.0
        %1023 = vmatprep.subr.mxu0 0.0
        %1024 = vmatpush1.msra.mxu0 0.0
        %1025 = vmatprep.mubr.f32.mxu0 0.0
        %1026 = vmatmul.mubr.f32.gmra.mrb[0].mxu0 %v834
        %v1027 = vpop.f32.mrb[0].mxu0
        %v1028 = vadd.f32 0.0, %v1027
        %v1029 = vpop.f32.mrb[0].mxu0
        %1030 = vmatprep.mubr.f32.mxu0 0.0
        %1031 = vmatmul.mubr.f32.gmra.mrb[0].mxu0 %v835
        %v1032 = vpop.f32.mrb[0].mxu0
        %v1033 = vadd.f32 0.0, %v1032
        %v1034 = vpop.f32.mrb[0].mxu0
        %1035 = vdwg.mxu0
        %v1036 = vld [vmem:[%s8] sm:$0xff]
        %v1037 = vld [vmem:[%s8 + $0x8] sm:$0xff]
        %1038 = vxpose.xlu0.b32.start [1/16] %v1028, 128
        %1039 = vxpose.xlu0.b32.cont [2/16] %v1033, 128
        %1040 = vxpose.xlu0.b32.cont [3/16] 0.0, 128
        %1041 = vxpose.xlu0.b32.cont [4/16] 0.0, 128
        %1042 = vxpose.xlu0.b32.cont [5/16] 0.0, 128
        %1043 = vxpose.xlu0.b32.cont [6/16] 0.0, 128
        %1044 = vxpose.xlu0.b32.cont [7/16] 0.0, 128
        %1045 = vxpose.xlu0.b32.cont [8/16] 0.0, 128
        %1046 = vxpose.xlu0.b32.cont [9/16] 0.0, 128
        %1047 = vxpose.xlu0.b32.cont [10/16] 0.0, 128
        %1048 = vxpose.xlu0.b32.cont [11/16] 0.0, 128
        %1049 = vxpose.xlu0.b32.cont [12/16] 0.0, 128
        %1050 = vxpose.xlu0.b32.cont [13/16] 0.0, 128
        %1051 = vxpose.xlu0.b32.cont [14/16] 0.0, 128
        %1052 = vxpose.xlu0.b32.cont [15/16] 0.0, 128
        %1053 = vxpose.xlu0.b32.end [16/16] 0.0, 128
        %v1054 = vpop.trf.xlu0
        %v1055 = vpop.trf.xlu0
        %v1056 = vpop.trf.xlu0
        %v1057 = vpop.trf.xlu0
        %v1058 = vpop.trf.xlu0
        %v1059 = vpop.trf.xlu0
        %v1060 = vpop.trf.xlu0
        %v1061 = vpop.trf.xlu0
        %v1062 = vpop.trf.xlu0
        %v1063 = vpop.trf.xlu0
        %v1064 = vpop.trf.xlu0
        %v1065 = vpop.trf.xlu0
        %v1066 = vpop.trf.xlu0
        %v1067 = vpop.trf.xlu0
        %v1068 = vpop.trf.xlu0
        %v1069 = vpop.trf.xlu0
        %1071 = vset.pattern.permute.xlu0 0
        %1072 = vperm.xlu0 %1071, %v1028
        %v1073 = vpop.permute.xlu0 %1072
        %1076 = vset.pattern.permute.xlu0 0
        %1077 = vperm.xlu0 %1076, %v1033
        %v1078 = vpop.permute.xlu0 %1077
        %v1080 = vlaneseq
        %v1081 = vshrl.u32 %v1080, 7
        %v1082 = vsub.s32 2, %v1081
        %v1083 = vrot.slane %v1054, %v1082
        %v1084 = vadd.f32 %v1073, %v1083
        %v1085 = vadd.f32 %v1078, %v1083
        %vm1086 = vcmp.gt.f32.partialorder %v1084, 0.0
        %vm1087 = vcmp.gt.f32.partialorder %v1085, 0.0
        %v1088 = vmul.f32 %v1084, 0.2
        %v1089 = vmul.f32 %v1085, 0.2
        %v1090 = vsel %vm1086, %v1084, %v1088
        %v1091 = vsel %vm1087, %v1085, %v1089
        %vm1092 = vcmp.gt.f32.partialorder %v1036, 0.0
        %vm1093 = vcmp.gt.f32.partialorder %v1037, 0.0
        %v1094 = vsel %vm1092, %v1090, -1e+30
        %v1095 = vsel %vm1093, %v1091, -1e+30
        %vm1096 = vcmask 130048
        %v1097 = vsel %vm1096, %v1094, -inf
        %1098 = vmax.xlane.f32.xlu0 %v1097
        %v1099 = vpop.xlane.xlu0 %1098
        %v1100 = vsel %vm1096, %v1095, -inf
        %1101 = vmax.xlane.f32.xlu0 %v1100
        %v1102 = vpop.xlane.xlu0 %1101
        %v1103 = vsub.f32 %v1094, %v1099
        %v1104 = vsub.f32 %v1095, %v1102
        %v1105 = vmul.f32 %v1103, 1.442695
        %v1106 = vpow.pop %v1105
        %v1107 = vmul.f32 %v1104, 1.442695
        %v1108 = vpow.pop %v1107
        %v1109 = vsel %vm1092, %v1106, 0.0
        %v1110 = vsel %vm1093, %v1108, 0.0
        %v1111 = vsel %vm1096, %v1109, 0.0
        %1112 = vadd.xlane.f32.xlu0 %v1111
        %v1113 = vpop.xlane.xlu0 %1112
        %v1114 = vsel %vm1096, %v1110, 0.0
        %1115 = vadd.xlane.f32.xlu0 %v1114
        %v1116 = vpop.xlane.xlu0 %1115
        %vm1117 = vcmp.gt.f32.partialorder %v1113, 0.0
        %vm1118 = vcmp.gt.f32.partialorder %v1116, 0.0
        %v1119 = vsel %vm1117, %v1113, 1.0
        %v1120 = vsel %vm1118, %v1116, 1.0
        %v1121 = vrcp.pop %v1119
        %v1122 = vrcp.pop %v1120
        %v1123 = vmul.f32 %v1109, %v1121
        %v1124 = vmul.f32 %v1110, %v1122
        %v1126 = vsel %vm1096, %v1123, 0
        %v1129 = vsel %vm1096, %v1124, 0
        %1131 = vmatprep.subr.mxu0 0.0
        %1132 = vmatpush1.msra.mxu0 %v951
        %1133 = vmatprep.subr.mxu0 0.0
        %1134 = vmatpush1.msra.mxu0 %v957
        %1135 = vmatprep.subr.mxu0 0.0
        %1136 = vmatpush1.msra.mxu0 0.0
        %1137 = vmatprep.subr.mxu0 0.0
        %1138 = vmatpush1.msra.mxu0 0.0
        %1139 = vmatprep.subr.mxu0 0.0
        %1140 = vmatpush1.msra.mxu0 0.0
        %1141 = vmatprep.subr.mxu0 0.0
        %1142 = vmatpush1.msra.mxu0 0.0
        %1143 = vmatprep.subr.mxu0 0.0
        %1144 = vmatpush1.msra.mxu0 0.0
        %1145 = vmatprep.subr.mxu0 0.0
        %1146 = vmatpush1.msra.mxu0 0.0
        %1147 = vmatprep.subr.mxu0 0.0
        %1148 = vmatpush1.msra.mxu0 0.0
        %1149 = vmatprep.subr.mxu0 0.0
        %1150 = vmatpush1.msra.mxu0 0.0
        %1151 = vmatprep.subr.mxu0 0.0
        %1152 = vmatpush1.msra.mxu0 0.0
        %1153 = vmatprep.subr.mxu0 0.0
        %1154 = vmatpush1.msra.mxu0 0.0
        %1155 = vmatprep.subr.mxu0 0.0
        %1156 = vmatpush1.msra.mxu0 0.0
        %1157 = vmatprep.subr.mxu0 0.0
        %1158 = vmatpush1.msra.mxu0 0.0
        %1159 = vmatprep.subr.mxu0 0.0
        %1160 = vmatpush1.msra.mxu0 0.0
        %1161 = vmatprep.subr.mxu0 0.0
        %1162 = vmatpush1.msra.mxu0 0.0
        %1163 = vmatprep.subr.mxu0 0.0
        %1164 = vmatpush1.msra.mxu0 0.0
        %1165 = vmatprep.subr.mxu0 0.0
        %1166 = vmatpush1.msra.mxu0 0.0
        %1167 = vmatprep.subr.mxu0 0.0
        %1168 = vmatpush1.msra.mxu0 0.0
        %1169 = vmatprep.subr.mxu0 0.0
        %1170 = vmatpush1.msra.mxu0 0.0
        %1171 = vmatprep.subr.mxu0 0.0
        %1172 = vmatpush1.msra.mxu0 0.0
        %1173 = vmatprep.subr.mxu0 0.0
        %1174 = vmatpush1.msra.mxu0 0.0
        %1175 = vmatprep.subr.mxu0 0.0
        %1176 = vmatpush1.msra.mxu0 0.0
        %1177 = vmatprep.subr.mxu0 0.0
        %1178 = vmatpush1.msra.mxu0 0.0
        %1179 = vmatprep.subr.mxu0 0.0
        %1180 = vmatpush1.msra.mxu0 0.0
        %1181 = vmatprep.subr.mxu0 0.0
        %1182 = vmatpush1.msra.mxu0 0.0
        %1183 = vmatprep.subr.mxu0 0.0
        %1184 = vmatpush1.msra.mxu0 0.0
        %1185 = vmatprep.subr.mxu0 0.0
        %1186 = vmatpush1.msra.mxu0 0.0
        %1187 = vmatprep.subr.mxu0 0.0
        %1188 = vmatpush1.msra.mxu0 0.0
        %1189 = vmatprep.subr.mxu0 0.0
        %1190 = vmatpush1.msra.mxu0 0.0
        %1191 = vmatprep.subr.mxu0 0.0
        %1192 = vmatpush1.msra.mxu0 0.0
        %1193 = vmatprep.subr.mxu0 0.0
        %1194 = vmatpush1.msra.mxu0 0.0
        %1195 = vmatprep.mubr.f32.mxu0 0.0
        %1196 = vmatmul.mubr.f32.gmra.mrb[0].mxu0 %v1126
        %v1197 = vpop.f32.mrb[0].mxu0
        %v1198 = vadd.f32 0.0, %v1197
        %v1199 = vpop.f32.mrb[0].mxu0
        %1200 = vmatprep.mubr.f32.mxu0 0.0
        %1201 = vmatmul.mubr.f32.gmra.mrb[0].mxu0 %v1129
        %v1202 = vpop.f32.mrb[0].mxu0
        %v1203 = vadd.f32 0.0, %v1202
        %v1204 = vpop.f32.mrb[0].mxu0
        %1205 = vdwg.mxu0
        %1206 = vset.pattern.permute.xlu0 1
        %1207 = vperm.xlu0 %1206, %v1028
        %v1208 = vpop.permute.xlu0 %1207
        %1210 = vset.pattern.permute.xlu0 1
        %1211 = vperm.xlu0 %1210, %v1033
        %v1212 = vpop.permute.xlu0 %1211
        %v1214 = vlaneseq
        %v1215 = vshrl.u32 %v1214, 7
        %v1216 = vsub.s32 3, %v1215
        %v1217 = vrot.slane %v1054, %v1216
        %v1218 = vadd.f32 %v1208, %v1217
        %v1219 = vadd.f32 %v1212, %v1217
        %vm1220 = vcmp.gt.f32.partialorder %v1218, 0.0
        %vm1221 = vcmp.gt.f32.partialorder %v1219, 0.0
        %v1222 = vmul.f32 %v1218, 0.2
        %v1223 = vmul.f32 %v1219, 0.2
        %v1224 = vsel %vm1220, %v1218, %v1222
        %v1225 = vsel %vm1221, %v1219, %v1223
        %v1226 = vsel %vm1092, %v1224, -1e+30
        %v1227 = vsel %vm1093, %v1225, -1e+30
        %v1228 = vsel %vm1096, %v1226, -inf
        %1229 = vmax.xlane.f32.xlu0 %v1228
        %v1230 = vpop.xlane.xlu0 %1229
        %v1231 = vsel %vm1096, %v1227, -inf
        %1232 = vmax.xlane.f32.xlu0 %v1231
        %v1233 = vpop.xlane.xlu0 %1232
        %v1234 = vsub.f32 %v1226, %v1230
        %v1235 = vsub.f32 %v1227, %v1233
        %v1236 = vmul.f32 %v1234, 1.442695
        %v1237 = vpow.pop %v1236
        %v1238 = vmul.f32 %v1235, 1.442695
        %v1239 = vpow.pop %v1238
        %v1240 = vsel %vm1092, %v1237, 0.0
        %v1241 = vsel %vm1093, %v1239, 0.0
        %v1242 = vsel %vm1096, %v1240, 0.0
        %1243 = vadd.xlane.f32.xlu0 %v1242
        %v1244 = vpop.xlane.xlu0 %1243
        %v1245 = vsel %vm1096, %v1241, 0.0
        %1246 = vadd.xlane.f32.xlu0 %v1245
        %v1247 = vpop.xlane.xlu0 %1246
        %vm1248 = vcmp.gt.f32.partialorder %v1244, 0.0
        %vm1249 = vcmp.gt.f32.partialorder %v1247, 0.0
        %v1250 = vsel %vm1248, %v1244, 1.0
        %v1251 = vsel %vm1249, %v1247, 1.0
        %v1252 = vrcp.pop %v1250
        %v1253 = vrcp.pop %v1251
        %v1254 = vmul.f32 %v1240, %v1252
        %v1255 = vmul.f32 %v1241, %v1253
        %v1257 = vsel %vm1096, %v1254, 0
        %v1260 = vsel %vm1096, %v1255, 0
        %1262 = vmatprep.subr.mxu0 0.0
        %1263 = vmatpush1.msra.mxu0 %v953
        %1264 = vmatprep.subr.mxu0 0.0
        %1265 = vmatpush1.msra.mxu0 %v959
        %1266 = vmatprep.subr.mxu0 0.0
        %1267 = vmatpush1.msra.mxu0 0.0
        %1268 = vmatprep.subr.mxu0 0.0
        %1269 = vmatpush1.msra.mxu0 0.0
        %1270 = vmatprep.subr.mxu0 0.0
        %1271 = vmatpush1.msra.mxu0 0.0
        %1272 = vmatprep.subr.mxu0 0.0
        %1273 = vmatpush1.msra.mxu0 0.0
        %1274 = vmatprep.subr.mxu0 0.0
        %1275 = vmatpush1.msra.mxu0 0.0
        %1276 = vmatprep.subr.mxu0 0.0
        %1277 = vmatpush1.msra.mxu0 0.0
        %1278 = vmatprep.subr.mxu0 0.0
        %1279 = vmatpush1.msra.mxu0 0.0
        %1280 = vmatprep.subr.mxu0 0.0
        %1281 = vmatpush1.msra.mxu0 0.0
        %1282 = vmatprep.subr.mxu0 0.0
        %1283 = vmatpush1.msra.mxu0 0.0
        %1284 = vmatprep.subr.mxu0 0.0
        %1285 = vmatpush1.msra.mxu0 0.0
        %1286 = vmatprep.subr.mxu0 0.0
        %1287 = vmatpush1.msra.mxu0 0.0
        %1288 = vmatprep.subr.mxu0 0.0
        %1289 = vmatpush1.msra.mxu0 0.0
        %1290 = vmatprep.subr.mxu0 0.0
        %1291 = vmatpush1.msra.mxu0 0.0
        %1292 = vmatprep.subr.mxu0 0.0
        %1293 = vmatpush1.msra.mxu0 0.0
        %1294 = vmatprep.subr.mxu0 0.0
        %1295 = vmatpush1.msra.mxu0 0.0
        %1296 = vmatprep.subr.mxu0 0.0
        %1297 = vmatpush1.msra.mxu0 0.0
        %1298 = vmatprep.subr.mxu0 0.0
        %1299 = vmatpush1.msra.mxu0 0.0
        %1300 = vmatprep.subr.mxu0 0.0
        %1301 = vmatpush1.msra.mxu0 0.0
        %1302 = vmatprep.subr.mxu0 0.0
        %1303 = vmatpush1.msra.mxu0 0.0
        %1304 = vmatprep.subr.mxu0 0.0
        %1305 = vmatpush1.msra.mxu0 0.0
        %1306 = vmatprep.subr.mxu0 0.0
        %1307 = vmatpush1.msra.mxu0 0.0
        %1308 = vmatprep.subr.mxu0 0.0
        %1309 = vmatpush1.msra.mxu0 0.0
        %1310 = vmatprep.subr.mxu0 0.0
        %1311 = vmatpush1.msra.mxu0 0.0
        %1312 = vmatprep.subr.mxu0 0.0
        %1313 = vmatpush1.msra.mxu0 0.0
        %1314 = vmatprep.subr.mxu0 0.0
        %1315 = vmatpush1.msra.mxu0 0.0
        %1316 = vmatprep.subr.mxu0 0.0
        %1317 = vmatpush1.msra.mxu0 0.0
        %1318 = vmatprep.subr.mxu0 0.0
        %1319 = vmatpush1.msra.mxu0 0.0
        %1320 = vmatprep.subr.mxu0 0.0
        %1321 = vmatpush1.msra.mxu0 0.0
        %1322 = vmatprep.subr.mxu0 0.0
        %1323 = vmatpush1.msra.mxu0 0.0
        %1324 = vmatprep.subr.mxu0 0.0
        %1325 = vmatpush1.msra.mxu0 0.0
        %1326 = vmatprep.mubr.f32.mxu0 0.0
        %1327 = vmatmul.mubr.f32.gmra.mrb[0].mxu0 %v1257
        %v1328 = vpop.f32.mrb[0].mxu0
        %v1329 = vadd.f32 0.0, %v1328
        %v1330 = vpop.f32.mrb[0].mxu0
        %1331 = vmatprep.mubr.f32.mxu0 0.0
        %1332 = vmatmul.mubr.f32.gmra.mrb[0].mxu0 %v1260
        %v1333 = vpop.f32.mrb[0].mxu0
        %v1334 = vadd.f32 0.0, %v1333
        %v1335 = vpop.f32.mrb[0].mxu0
        %1336 = vdwg.mxu0
        %v1337 = vld [vmem:[%s7] sm:$0x3]
        %v1339 = vlaneseq
        %v1340 = vshrl.u32 %v1339, 7
        %v1341 = vsub.s32 0, %v1340
        %v1342 = vrot.slane %v1337, %v1341
        %v1343 = vlaneseq
        %v1344 = vshrl.u32 %v1343, 7
        %v1345 = vsub.s32 1, %v1344
        %v1346 = vrot.slane %v1337, %v1345
        %v1349 = vadd.f32 %v1198, %v1342
        %v1350 = vadd.f32 %v1329, %v1346
        %v1351 = vadd.f32 %v1203, %v1342
        %v1352 = vadd.f32 %v1334, %v1346
        %v1353 = vld [vmem:[#allocation6] sm:$0xff]
        %v1354 = vld [vmem:[#allocation6 + $0x8] sm:$0xff]
        %v1355 = vld [vmem:[#allocation6 + $0x10] sm:$0xff]
        %v1356 = vld [vmem:[#allocation6 + $0x18] sm:$0xff]
        %v1357 = vld [vmem:[#allocation6 + $0x20] sm:$0xff]
        %v1358 = vld [vmem:[#allocation6 + $0x28] sm:$0xff]
        %v1359 = vld [vmem:[#allocation6 + $0x30] sm:$0xff]
        %v1360 = vld [vmem:[#allocation6 + $0x38] sm:$0xff]
        %v1361 = vld [vmem:[#allocation6 + $0x40] sm:$0xff]
        %v1362 = vld [vmem:[#allocation6 + $0x48] sm:$0xff]
        %v1363 = vld [vmem:[#allocation6 + $0x50] sm:$0xff]
        %v1364 = vld [vmem:[#allocation6 + $0x58] sm:$0xff]
        %v1365 = vld [vmem:[#allocation6 + $0x60] sm:$0xff]
        %v1366 = vld [vmem:[#allocation6 + $0x68] sm:$0xff]
        %v1367 = vld [vmem:[#allocation6 + $0x70] sm:$0xff]
        %v1368 = vld [vmem:[#allocation6 + $0x78] sm:$0xff]
        %v1369 = vld [vmem:[#allocation6 + $0x80] sm:$0xff]
        %v1370 = vld [vmem:[#allocation6 + $0x88] sm:$0xff]
        %v1371 = vld [vmem:[#allocation6 + $0x90] sm:$0xff]
        %v1372 = vld [vmem:[#allocation6 + $0x98] sm:$0xff]
        %v1373 = vld [vmem:[#allocation6 + $0xa0] sm:$0xff]
        %v1374 = vld [vmem:[#allocation6 + $0xa8] sm:$0xff]
        %v1375 = vld [vmem:[#allocation6 + $0xb0] sm:$0xff]
        %v1376 = vld [vmem:[#allocation6 + $0xb8] sm:$0xff]
        %v1377 = vld [vmem:[#allocation6 + $0xc0] sm:$0xff]
        %v1378 = vld [vmem:[#allocation6 + $0xc8] sm:$0xff]
        %v1379 = vld [vmem:[#allocation6 + $0xd0] sm:$0xff]
        %v1380 = vld [vmem:[#allocation6 + $0xd8] sm:$0xff]
        %v1381 = vld [vmem:[#allocation6 + $0xe0] sm:$0xff]
        %v1382 = vld [vmem:[#allocation6 + $0xe8] sm:$0xff]
        %v1383 = vld [vmem:[#allocation6 + $0xf0] sm:$0xff]
        %v1384 = vld [vmem:[#allocation6 + $0xf8] sm:$0xff]
        %v1385 = vld [vmem:[#allocation6 + $0x100] sm:$0xff]
        %v1386 = vld [vmem:[#allocation6 + $0x108] sm:$0xff]
        %v1387 = vld [vmem:[#allocation6 + $0x110] sm:$0xff]
        %v1388 = vld [vmem:[#allocation6 + $0x118] sm:$0xff]
        %v1389 = vld [vmem:[#allocation6 + $0x120] sm:$0xff]
        %v1390 = vld [vmem:[#allocation6 + $0x128] sm:$0xff]
        %v1391 = vld [vmem:[#allocation6 + $0x130] sm:$0xff]
        %v1392 = vld [vmem:[#allocation6 + $0x138] sm:$0xff]
        %v1393 = vld [vmem:[#allocation6 + $0x140] sm:$0xff]
        %v1394 = vld [vmem:[#allocation6 + $0x148] sm:$0xff]
        %v1395 = vld [vmem:[#allocation6 + $0x150] sm:$0xff]
        %v1396 = vld [vmem:[#allocation6 + $0x158] sm:$0xff]
        %v1397 = vld [vmem:[#allocation6 + $0x160] sm:$0xff]
        %v1398 = vld [vmem:[#allocation6 + $0x168] sm:$0xff]
        %v1399 = vld [vmem:[#allocation6 + $0x170] sm:$0xff]
        %v1400 = vld [vmem:[#allocation6 + $0x178] sm:$0xff]
        %v1401 = vld [vmem:[#allocation6 + $0x180] sm:$0xff]
        %v1402 = vld [vmem:[#allocation6 + $0x188] sm:$0xff]
        %v1403 = vld [vmem:[#allocation6 + $0x190] sm:$0xff]
        %v1404 = vld [vmem:[#allocation6 + $0x198] sm:$0xff]
        %v1405 = vld [vmem:[#allocation6 + $0x1a0] sm:$0xff]
        %v1406 = vld [vmem:[#allocation6 + $0x1a8] sm:$0xff]
        %v1407 = vld [vmem:[#allocation6 + $0x1b0] sm:$0xff]
        %v1408 = vld [vmem:[#allocation6 + $0x1b8] sm:$0xff]
        %v1409 = vld [vmem:[#allocation6 + $0x1c0] sm:$0xff]
        %v1410 = vld [vmem:[#allocation6 + $0x1c8] sm:$0xff]
        %v1411 = vld [vmem:[#allocation6 + $0x1d0] sm:$0xff]
        %v1412 = vld [vmem:[#allocation6 + $0x1d8] sm:$0xff]
        %v1413 = vld [vmem:[#allocation6 + $0x1e0] sm:$0xff]
        %v1414 = vld [vmem:[#allocation6 + $0x1e8] sm:$0xff]
        %v1415 = vld [vmem:[#allocation6 + $0x1f0] sm:$0xff]
        %v1416 = vld [vmem:[#allocation6 + $0x1f8] sm:$0xff]
        %v1417 = vld [vmem:[%s10] sm:$0x3]
        %v1418 = vld [vmem:[%s11] sm:$0x3]
        %v1419 = vadd.f32 %v1349, %v1351
        %v1420 = vrot.slane %v1419, 4
        %v1421 = vadd.f32 %v1419, %v1420
        %v1422 = vrot.slane %v1421, 2
        %v1423 = vadd.f32 %v1421, %v1422
        %v1424 = vrot.slane %v1423, 1
        %v1425 = vadd.f32 %v1423, %v1424
        %v1426 = vadd.f32 %v1350, %v1352
        %v1427 = vrot.slane %v1426, 4
        %v1428 = vadd.f32 %v1426, %v1427
        %v1429 = vrot.slane %v1428, 2
        %v1430 = vadd.f32 %v1428, %v1429
        %v1431 = vrot.slane %v1430, 1
        %v1432 = vadd.f32 %v1430, %v1431
        %v1433 = vmul.f32 %v1425, %v716
        %v1434 = vmul.f32 %v1432, %v716
        %v1435 = vmul.f32 %v1349, %v1349
        %v1436 = vmul.f32 %v1350, %v1350
        %v1437 = vmul.f32 %v1351, %v1351
        %v1438 = vmul.f32 %v1352, %v1352
        %v1439 = vadd.f32 %v1435, %v1437
        %v1440 = vrot.slane %v1439, 4
        %v1441 = vadd.f32 %v1439, %v1440
        %v1442 = vrot.slane %v1441, 2
        %v1443 = vadd.f32 %v1441, %v1442
        %v1444 = vrot.slane %v1443, 1
        %v1445 = vadd.f32 %v1443, %v1444
        %v1446 = vadd.f32 %v1436, %v1438
        %v1447 = vrot.slane %v1446, 4
        %v1448 = vadd.f32 %v1446, %v1447
        %v1449 = vrot.slane %v1448, 2
        %v1450 = vadd.f32 %v1448, %v1449
        %v1451 = vrot.slane %v1450, 1
        %v1452 = vadd.f32 %v1450, %v1451
        %v1453 = vmul.f32 %v1445, %v716
        %v1454 = vmul.f32 %v1452, %v716
        %v1455 = vsel %vm728, %v1433, %v1453
        %v1456 = vsel %vm728, %v1434, %v1454
        %1457 = vmatprep.subr.mxu0 %v1354
        %1458 = vmatpush1.msra.mxu0 %v1353
        %1459 = vmatprep.subr.mxu0 %v1356
        %1460 = vmatpush1.msra.mxu0 %v1355
        %1461 = vmatprep.subr.mxu0 %v1358
        %1462 = vmatpush1.msra.mxu0 %v1357
        %1463 = vmatprep.subr.mxu0 %v1360
        %1464 = vmatpush1.msra.mxu0 %v1359
        %1465 = vmatprep.subr.mxu0 %v1362
        %1466 = vmatpush1.msra.mxu0 %v1361
        %1467 = vmatprep.subr.mxu0 %v1364
        %1468 = vmatpush1.msra.mxu0 %v1363
        %1469 = vmatprep.subr.mxu0 %v1366
        %1470 = vmatpush1.msra.mxu0 %v1365
        %1471 = vmatprep.subr.mxu0 %v1368
        %1472 = vmatpush1.msra.mxu0 %v1367
        %1473 = vmatprep.subr.mxu0 %v1370
        %1474 = vmatpush1.msra.mxu0 %v1369
        %1475 = vmatprep.subr.mxu0 %v1372
        %1476 = vmatpush1.msra.mxu0 %v1371
        %1477 = vmatprep.subr.mxu0 %v1374
        %1478 = vmatpush1.msra.mxu0 %v1373
        %1479 = vmatprep.subr.mxu0 %v1376
        %1480 = vmatpush1.msra.mxu0 %v1375
        %1481 = vmatprep.subr.mxu0 %v1378
        %1482 = vmatpush1.msra.mxu0 %v1377
        %1483 = vmatprep.subr.mxu0 %v1380
        %1484 = vmatpush1.msra.mxu0 %v1379
        %1485 = vmatprep.subr.mxu0 %v1382
        %1486 = vmatpush1.msra.mxu0 %v1381
        %1487 = vmatprep.subr.mxu0 %v1384
        %1488 = vmatpush1.msra.mxu0 %v1383
        %1489 = vmatprep.subr.mxu0 %v1386
        %1490 = vmatpush1.msra.mxu0 %v1385
        %1491 = vmatprep.subr.mxu0 %v1388
        %1492 = vmatpush1.msra.mxu0 %v1387
        %1493 = vmatprep.subr.mxu0 %v1390
        %1494 = vmatpush1.msra.mxu0 %v1389
        %1495 = vmatprep.subr.mxu0 %v1392
        %1496 = vmatpush1.msra.mxu0 %v1391
        %1497 = vmatprep.subr.mxu0 %v1394
        %1498 = vmatpush1.msra.mxu0 %v1393
        %1499 = vmatprep.subr.mxu0 %v1396
        %1500 = vmatpush1.msra.mxu0 %v1395
        %1501 = vmatprep.subr.mxu0 %v1398
        %1502 = vmatpush1.msra.mxu0 %v1397
        %1503 = vmatprep.subr.mxu0 %v1400
        %1504 = vmatpush1.msra.mxu0 %v1399
        %1505 = vmatprep.subr.mxu0 %v1402
        %1506 = vmatpush1.msra.mxu0 %v1401
        %1507 = vmatprep.subr.mxu0 %v1404
        %1508 = vmatpush1.msra.mxu0 %v1403
        %1509 = vmatprep.subr.mxu0 %v1406
        %1510 = vmatpush1.msra.mxu0 %v1405
        %1511 = vmatprep.subr.mxu0 %v1408
        %1512 = vmatpush1.msra.mxu0 %v1407
        %1513 = vmatprep.subr.mxu0 %v1410
        %1514 = vmatpush1.msra.mxu0 %v1409
        %1515 = vmatprep.subr.mxu0 %v1412
        %1516 = vmatpush1.msra.mxu0 %v1411
        %1517 = vmatprep.subr.mxu0 %v1414
        %1518 = vmatpush1.msra.mxu0 %v1413
        %1519 = vmatprep.subr.mxu0 %v1416
        %1520 = vmatpush1.msra.mxu0 %v1415
        %1521 = vmatprep.mubr.f32.mxu0 %v1456
        %1522 = vmatmul.mubr.f32.gmra.mrb[0].mxu0 %v1455
        %v1523 = vpop.f32.mrb[0].mxu0
        %v1524 = vadd.f32 0.0, %v1523
        %v1525 = vpop.f32.mrb[0].mxu0
        %v1526 = vadd.f32 0.0, %v1525
        %1527 = vdwg.mxu0
        %v1528 = vmul.f32 %v1524, %v1524
        %v1529 = vmul.f32 %v1526, %v1526
        %v1532 = vrot.slane %v1528, 7
        %v1533 = vrot.slane %v1529, 7
        %v1536 = vsub.f32 %v1524, %v1532
        %v1537 = vsub.f32 %v1526, %v1533
        %v1538 = vmax.f32 %v1536, 0.0
        %v1539 = vmax.f32 %v1537, 0.0
        %v1540 = vlaneseq
        %v1541 = vshrl.u32 %v1540, 7
        %v1542 = vsub.s32 0, %v1541
        %v1543 = vrot.slane %v1524, %v1542
        %v1544 = vlaneseq
        %v1545 = vshrl.u32 %v1544, 7
        %v1546 = vsub.s32 0, %v1545
        %v1547 = vrot.slane %v1526, %v1546
        %v1548 = vsub.f32 %v1349, %v1543
        %v1549 = vsub.f32 %v1350, %v1547
        %v1550 = vsub.f32 %v1351, %v1543
        %v1551 = vsub.f32 %v1352, %v1547
        %v1552 = vadd.f32 %v1538, 1e-05
        %v1553 = vadd.f32 %v1539, 1e-05
        %v1554 = vrsqrt.pop %v1552
        %v1555 = vrsqrt.pop %v1553
        %v1556 = vlaneseq
        %v1557 = vshrl.u32 %v1556, 7
        %v1558 = vsub.s32 1, %v1557
        %v1559 = vrot.slane %v1554, %v1558
        %v1560 = vlaneseq
        %v1561 = vshrl.u32 %v1560, 7
        %v1562 = vsub.s32 1, %v1561
        %v1563 = vrot.slane %v1555, %v1562
        %v1564 = vmul.f32 %v1548, %v1559
        %v1565 = vmul.f32 %v1549, %v1563
        %v1566 = vmul.f32 %v1550, %v1559
        %v1567 = vmul.f32 %v1551, %v1563
        %v1569 = vlaneseq
        %v1570 = vshrl.u32 %v1569, 7
        %v1571 = vsub.s32 0, %v1570
        %v1572 = vrot.slane %v1417, %v1571
        %v1573 = vlaneseq
        %v1574 = vshrl.u32 %v1573, 7
        %v1575 = vsub.s32 1, %v1574
        %v1576 = vrot.slane %v1417, %v1575
        %v1579 = vmul.f32 %v1564, %v1572
        %v1580 = vmul.f32 %v1565, %v1576
        %v1581 = vmul.f32 %v1566, %v1572
        %v1582 = vmul.f32 %v1567, %v1576
        %v1584 = vlaneseq
        %v1585 = vshrl.u32 %v1584, 7
        %v1586 = vsub.s32 0, %v1585
        %v1587 = vrot.slane %v1418, %v1586
        %v1588 = vlaneseq
        %v1589 = vshrl.u32 %v1588, 7
        %v1590 = vsub.s32 1, %v1589
        %v1591 = vrot.slane %v1418, %v1590
        %v1594 = vadd.f32 %v1579, %v1587
        %v1595 = vadd.f32 %v1580, %v1591
        %v1596 = vadd.f32 %v1581, %v1587
        %v1597 = vadd.f32 %v1582, %v1591
        %v1598 = vadd.f32 %v1594, %v665
        %v1599 = vadd.f32 %v1595, %v667
        %v1600 = vadd.f32 %v1596, %v671
        %v1601 = vadd.f32 %v1597, %v673
        %v1602 = vmax.f32 %v1598, 0.0
        %v1603 = vmax.f32 %v1599, 0.0
        %v1604 = vmax.f32 %v1600, 0.0
        %v1605 = vmax.f32 %v1601, 0.0
        %1606 = vst [vmem:[%s457] sm:$0xff] %v1602
        %1607 = vst [vmem:[%s457 + $0x8] sm:$0xff] %v1603
        %1608 = vst [vmem:[%s457 + $0x10] sm:$0xff] %v1604
        %1609 = vst [vmem:[%s457 + $0x18] sm:$0xff] %v1605
        %p1610 = scmp.lt.s32.totalorder %s25, 3
        %s1611 = scalar_select %p1610, %s25, 3
        %s1612 = smul.addr %s1611, 4
        %s1613 = smul.addr %s1612, 8
        %s1614 = scalar_lea.vmem %s12, %s1613
        // Predicated region
        $region81: #{spatio_temporal_layer_gat_forward.1} parent=67 // pred_check
          %p1615 = pneg %p300
        $region82: #{spatio_temporal_layer_gat_forward.1} parent=67 // pred_check_branch
          %1617 = sbr.rel (%p1615) target = $region84
        $region83: #{spatio_temporal_layer_gat_forward.1} parent=67 // pred_region
          _
        $region84: #{spatio_temporal_layer_gat_forward.1} parent=67 // pred_fallthru
          _
      $region68: #{spatio_temporal_layer_gat_forward.1} parent=5 // pred_fallthru
        _
      %p1618 = scmp.le.s32.totalorder 2, %s20
      // Predicated region
      $region85: #{spatio_temporal_layer_gat_forward.1} parent=5 // pred_check
        %p1619 = pneg %p1618
      $region86: #{spatio_temporal_layer_gat_forward.1} parent=5 // pred_check_branch
        %1621 = sbr.rel (%p1619) target = $region88
      $region87: #{spatio_temporal_layer_gat_forward.1} parent=5 // pred_region
        %s1622 = ssub.s32 %s20, 2
        // Predicated region
        $region89: #{spatio_temporal_layer_gat_forward.1} parent=87 // pred_check
          %p1623 = pneg %p306
        $region90: #{spatio_temporal_layer_gat_forward.1} parent=87 // pred_check_branch
          %1625 = sbr.rel (%p1623) target = $region92
        $region91: #{spatio_temporal_layer_gat_forward.1} parent=87 // pred_region
          %p1626 = scmp.lt.s32.totalorder %s26, 3
          %s1627 = scalar_select %p1626, %s26, 3
          %s1628 = smul.addr %s1627, 4
          %s1629 = smul.addr %s1628, 8
          %s1630 = scalar_lea.vmem %s12, %s1629
        $region92: #{spatio_temporal_layer_gat_forward.1} parent=87 // pred_fallthru
          _
      $region88: #{spatio_temporal_layer_gat_forward.1} parent=5 // pred_fallthru
        _
    $region6: #{spatio_temporal_layer_gat_forward.1} parent=1 // loop_footer
      %s24 = sadd.s32 1, %s20
    $region7: #{spatio_temporal_layer_gat_forward.1} parent=1 // loop_footer_branch
      %19 = sbr.rel target = $region3
    $region8: #{spatio_temporal_layer_gat_forward.1} parent=1 // loop_exit
      _
    %1631 = vsyncpa [#allocation3], 1
    %s1632 = scalar_lea.sflag [#allocation3], 1
    %1633 = vsyncpa %s1632, 1
    %1634 = vsyncpa [#allocation5], 1

</llo_original>
